<compile_context>
chip_gen: v6e
topology: v6e:2x2x1
jax: 0.10.0
libtpu: 0.0.40
codegen_flags: <defaults>
</compile_context>

<pallas_src>
import jax
import jax.numpy as jnp
from jax.experimental import pallas as pl
from jax.experimental.pallas import tpu as pltpu


def _round_up(x, m):
    return (x + m - 1) // m * m


def _pick_tile():
    # v6e/v7x MXUs are 2x256x256 -> 256-row tiles; v5e (4x128x128) keeps 128.
    try:
        kind = jax.devices()[0].device_kind.lower()
    except Exception:
        return 128
    return 256 if ("v6" in kind or "v7" in kind) else 128


def _unigin_kernel(eps_ref, hts_ref, h_ref, x_ref, w_ref, o_ref, xe_ref):
    """Fused UniGIN forward for one tile of node rows.

    eps_ref : SMEM (1,)        f32  GIN epsilon (scalar, no VMEM load)
    hts_ref : VMEM (E_p, N_p)  f32  deg-scaled H^T (resident, constant map)
    h_ref   : VMEM (TM,  E_p)  f32  node-row tile of incidence H
    x_ref   : VMEM (N_p, C)    f32  full node features (resident)
    w_ref   : VMEM (C,   HO_p) f32  linear weight, output cols zero-padded
    o_ref   : VMEM (TM,  HO_p) f32  output tile (lane-dense store)
    xe_ref  : VMEM (E_p, C)    f32  scratch: hyperedge feats, persists over grid
    """
    i = pl.program_id(0)
    tm = h_ref.shape[0]

    # Xe = scatter_mean(X[vertex], edges)  ==  (H^T / deg) @ X.
    # Computed once and kept on-chip for every node tile (no HBM round trip).
    @pl.when(i == 0)
    def _():
        xe_ref[...] = jnp.dot(hts_ref[...], x_ref[...],
                              preferred_element_type=jnp.float32)

    # Xv = scatter_sum(Xe[edges], vertex)  ==  H[tile] @ Xe.
    xv = jnp.dot(h_ref[...], xe_ref[...], preferred_element_type=jnp.float32)

    # X row-tile is a static-sized, aligned slice of the resident full X block.
    row0 = pl.multiple_of(i * tm, tm)
    x_tile = x_ref[pl.ds(row0, tm), :]

    z = (1.0 + eps_ref[0]) * x_tile + xv
    o_ref[...] = jnp.dot(z, w_ref[...], preferred_element_type=jnp.float32)


def unigin_conv(X, vertex, edges, W_t, eps, num_edges, *, tile=None):
    """X: (N, C) f32; vertex/edges: (nnz,) i32; W_t: (C, heads*out) f32."""
    if tile is None:
        tile = _pick_tile()

    N, C = X.shape
    E = num_edges
    HO = W_t.shape[1]

    TM = tile
    N_p = _round_up(N, TM)        # node rows: grid axis + Xe contraction dim
    E_p = _round_up(E, 128)       # hyperedges: lane dim of H tiles / Xv contraction
    HO_p = _round_up(HO, 128)     # lane-dense output stores (unmasked vst)

    # ---- Host-side incidence build (outside the kernel) ---------------------
    # TODO(synk): for production nnz / static graphs, cache H & H^T across calls
    # or switch to a CSR + PrefetchScalarGridSpec gather path instead of this
    # dense XLA scatter + dense-matmul formulation.
    H = jnp.zeros((N_p, E_p), jnp.float32).at[vertex, edges].add(1.0)
    deg = jnp.sum(H, axis=0)                          # (E_p,) exact integer counts
    inv_deg = 1.0 / jnp.maximum(deg, 1.0)             # padded edges: deg=0 -> 1,
                                                      # benign (rows are all-zero)
    # Fold the mean's 1/deg into H^T rows (kept in f32 for the exact-count path);
    # the Xe matmul then needs no extra operand and no epilogue multiply.
    HT_s = H.T * inv_deg[:, None]                     # (E_p, N_p) f32

    X_p = jnp.zeros((N_p, C), jnp.float32).at[:N, :].set(X)
    W_p = jnp.zeros((C, HO_p), jnp.float32).at[:, :HO].set(W_t)
    eps_arr = jnp.asarray([eps], jnp.float32)

    grid = (N_p // TM,)

    cparams = pltpu.CompilerParams(
        # Xe is built at step 0 into a persistent scratch, so the node-tile axis
        # must run sequentially on one core -> "arbitrary" (also sidesteps the
        # v7x 2-TC imbalance a tiny odd parallel axis would cause).
        dimension_semantics=("arbitrary",),
        vmem_limit_bytes=32 * 1024 * 1024,
    )

    out_p = pl.pallas_call(
        _unigin_kernel,
        out_shape=jax.ShapeDtypeStruct((N_p, HO_p), jnp.float32),
        grid=grid,
        in_specs=[
            pl.BlockSpec(memory_space=pltpu.MemorySpace.SMEM),   # eps scalar
            pl.BlockSpec((E_p, N_p), lambda i: (0, 0)),          # H^T/deg, resident
            pl.BlockSpec((TM, E_p), lambda i: (i, 0)),           # H node-row tile
            pl.BlockSpec((N_p, C), lambda i: (0, 0)),            # X, resident
            pl.BlockSpec((C, HO_p), lambda i: (0, 0)),           # W, resident
        ],
        out_specs=pl.BlockSpec((TM, HO_p), lambda i: (i, 0)),
        scratch_shapes=[pltpu.VMEM((E_p, C), jnp.float32)],      # Xe stays on-chip
        compiler_params=cparams,
    )(eps_arr, HT_s, H, X_p, W_p)

    return out_p[:N, :HO]


def unigin_reference(X, vertex, edges, W_t, eps, num_edges):
    """Pure-JAX mirror of the PyTorch forward (segment ops == torch scatter)."""
    N = X.shape[0]
    Xve = X[vertex]
    sums = jax.ops.segment_sum(Xve, edges, num_segments=num_edges)
    cnts = jax.ops.segment_sum(jnp.ones_like(edges, jnp.float32), edges,
                               num_segments=num_edges)
    Xe = sums / jnp.maximum(cnts, 1.0)[:, None]
    Xev = Xe[edges]
    Xv = jax.ops.segment_sum(Xev, vertex, num_segments=N)
    return ((1.0 + eps) * X + Xv) @ W_t


if __name__ == "__main__":
    key = jax.random.PRNGKey(0)
    k_x, k_v, k_e, k_w = jax.random.split(key, 4)

    N = 384             # number of nodes
    E = 192             # number of hyperedges (padded to 256 inside)
    NNZ = 2048          # number of (vertex, edge) incidence pairs
    IN_CH = 16          # in_channels
    HEADS = 2
    OUT_CH = 8          # heads * out_channels = 16 output features
    EPS = 0.1           # nn.Parameter init value

    X = jax.random.normal(k_x, (N, IN_CH), dtype=jnp.float32)
    vertex = jax.random.randint(k_v, (NNZ,), 0, N, dtype=jnp.int32)
    edges = jax.random.randint(k_e, (NNZ,), 0, E, dtype=jnp.int32)

    # nn.Linear(in, heads*out, bias=False) weight: (heads*out, in). We pass W.T.
    W = jax.random.normal(k_w, (HEADS * OUT_CH, IN_CH), dtype=jnp.float32)
    W = W * (1.0 / jnp.sqrt(IN_CH))
    W_t = W.T                                                    # (IN_CH, heads*out)

    out = unigin_conv(X, vertex, edges, W_t, EPS, E)
    out = jax.block_until_ready(out)

    ref = unigin_reference(X, vertex, edges, W_t, EPS, E)
    assert out.shape == (N, HEADS * OUT_CH)
    assert jnp.allclose(out, ref, atol=1e-3, rtol=1e-3), "mismatch vs reference"

    print("KERNEL_OK")
</pallas_src>

<mosaic_0001>
module attributes {stable_mosaic.version = 11 : i64} {
  func.func @_unigin_kernel(%arg0: i32, %arg1: memref<1xf32, #tpu.memory_space<smem>>, %arg2: memref<256x384xf32, #tpu.memory_space<vmem>>, %arg3: memref<128x256xf32, #tpu.memory_space<vmem>>, %arg4: memref<384x16xf32, #tpu.memory_space<vmem>>, %arg5: memref<16x128xf32, #tpu.memory_space<vmem>>, %arg6: memref<128x128xf32, #tpu.memory_space<vmem>>, %arg7: memref<256x16xf32, #tpu.memory_space<vmem>>) attributes {dimension_semantics = [#tpu.dimension_semantics<arbitrary>], iteration_bounds = array<i64: 3>, scalar_prefetch = 0 : i64, scratch_operands = 1 : i64, tpu.core_type = #tpu.core_type<tc>, window_params = [{transform_indices = @transform_0, window_bounds = array<i64: 1>}, {pipeline_mode = #tpu.pipeline_mode<synchronous>, transform_indices = @transform_1, window_bounds = array<i64: 256, 384>}, {transform_indices = @transform_2, window_bounds = array<i64: 128, 256>}, {pipeline_mode = #tpu.pipeline_mode<synchronous>, transform_indices = @transform_3, window_bounds = array<i64: 384, 16>}, {pipeline_mode = #tpu.pipeline_mode<synchronous>, transform_indices = @transform_4, window_bounds = array<i64: 16, 128>}, {transform_indices = @transform_5, window_bounds = array<i64: 128, 128>}]} {
    %c0_i32 = arith.constant 0 : i32
    %0 = arith.cmpi eq, %arg0, %c0_i32 : i32
    %1 = arith.extui %0 : i1 to i32
    %c0_i32_0 = arith.constant 0 : i32
    %2 = arith.cmpi ne, %1, %c0_i32_0 : i32
    scf.if %2 {
      %c0_12 = arith.constant 0 : index
      %c0_13 = arith.constant 0 : index
      %18 = vector.load %arg2[%c0_12, %c0_13] : memref<256x384xf32, #tpu.memory_space<vmem>>, vector<256x384xf32>
      %c0_14 = arith.constant 0 : index
      %c0_15 = arith.constant 0 : index
      %19 = vector.load %arg4[%c0_14, %c0_15] : memref<384x16xf32, #tpu.memory_space<vmem>>, vector<384x16xf32>
      %cst_16 = arith.constant dense<0.000000e+00> : vector<256x16xf32>
      %20 = tpu.matmul %18, %19, %cst_16 {dimension_numbers = #tpu.dot_dimension_numbers<[1], [0], [0], [1], [0, 0, 1, 1], [], []>} : vector<256x384xf32>, vector<384x16xf32>, vector<256x16xf32> -> vector<256x16xf32>
      %c0_17 = arith.constant 0 : index
      %c0_18 = arith.constant 0 : index
      %21 = vector.load %arg7[%c0_17, %c0_18] : memref<256x16xf32, #tpu.memory_space<vmem>>, vector<256x16xf32>
      tpu.vector_store %arg7[%c0_17, %c0_18], %20 {strides = array<i32>} : memref<256x16xf32, #tpu.memory_space<vmem>>, vector<256x16xf32>,
    } else {
    }
    %c0 = arith.constant 0 : index
    %c0_1 = arith.constant 0 : index
    %3 = vector.load %arg3[%c0, %c0_1] : memref<128x256xf32, #tpu.memory_space<vmem>>, vector<128x256xf32>
    %c0_2 = arith.constant 0 : index
    %c0_3 = arith.constant 0 : index
    %4 = vector.load %arg7[%c0_2, %c0_3] : memref<256x16xf32, #tpu.memory_space<vmem>>, vector<256x16xf32>
    %cst = arith.constant dense<0.000000e+00> : vector<128x16xf32>
    %5 = tpu.matmul %3, %4, %cst {dimension_numbers = #tpu.dot_dimension_numbers<[1], [0], [0], [1], [0, 0, 1, 1], [], []>} : vector<128x256xf32>, vector<256x16xf32>, vector<128x16xf32> -> vector<128x16xf32>
    %c128_i32 = arith.constant 128 : i32
    %6 = arith.muli %arg0, %c128_i32 : i32
    %7 = tpu.assume_multiple %6, 128 : i32
    %8 = arith.index_cast %7 : i32 to index
    %c0_4 = arith.constant 0 : index
    %9 = vector.load %arg4[%8, %c0_4] : memref<384x16xf32, #tpu.memory_space<vmem>>, vector<128x16xf32>
    %c0_5 = arith.constant 0 : index
    %10 = memref.load %arg1[%c0_5] : memref<1xf32, #tpu.memory_space<smem>>
    %cst_6 = arith.constant 1.000000e+00 : f32
    %11 = arith.addf %cst_6, %10 : f32
    %12 = vector.broadcast %11 : f32 to vector<128x16xf32>
    %13 = arith.mulf %12, %9 : vector<128x16xf32>
    %14 = arith.addf %13, %5 : vector<128x16xf32>
    %c0_7 = arith.constant 0 : index
    %c0_8 = arith.constant 0 : index
    %15 = vector.load %arg5[%c0_7, %c0_8] : memref<16x128xf32, #tpu.memory_space<vmem>>, vector<16x128xf32>
    %cst_9 = arith.constant dense<0.000000e+00> : vector<128x128xf32>
    %16 = tpu.matmul %14, %15, %cst_9 {dimension_numbers = #tpu.dot_dimension_numbers<[1], [0], [0], [1], [0, 0, 1, 1], [], []>} : vector<128x16xf32>, vector<16x128xf32>, vector<128x128xf32> -> vector<128x128xf32>
    %c0_10 = arith.constant 0 : index
    %c0_11 = arith.constant 0 : index
    %17 = vector.load %arg6[%c0_10, %c0_11] : memref<128x128xf32, #tpu.memory_space<vmem>>, vector<128x128xf32>
    tpu.vector_store %arg6[%c0_10, %c0_11], %16 {strides = array<i32>} : memref<128x128xf32, #tpu.memory_space<vmem>>, vector<128x128xf32>,
    return
  }
  func.func @transform_0(%arg0: i32) -> i32 {
    %c0_i32 = arith.constant 0 : i32
    %c0_i32_0 = arith.constant 0 : i32
    return %c0_i32 : i32
  }
  func.func @transform_1(%arg0: i32) -> (i32, i32) {
    %c0_i32 = arith.constant 0 : i32
    %c0_i32_0 = arith.constant 0 : i32
    %c0_i32_1 = arith.constant 0 : i32
    return %c0_i32, %c0_i32_0 : i32, i32
  }
  func.func @transform_2(%arg0: i32) -> (i32, i32) {
    %c0_i32 = arith.constant 0 : i32
    %c0_i32_0 = arith.constant 0 : i32
    return %arg0, %c0_i32 : i32, i32
  }
  func.func @transform_3(%arg0: i32) -> (i32, i32) {
    %c0_i32 = arith.constant 0 : i32
    %c0_i32_0 = arith.constant 0 : i32
    %c0_i32_1 = arith.constant 0 : i32
    return %c0_i32, %c0_i32_0 : i32, i32
  }
  func.func @transform_4(%arg0: i32) -> (i32, i32) {
    %c0_i32 = arith.constant 0 : i32
    %c0_i32_0 = arith.constant 0 : i32
    %c0_i32_1 = arith.constant 0 : i32
    return %c0_i32, %c0_i32_0 : i32, i32
  }
  func.func @transform_5(%arg0: i32) -> (i32, i32) {
    %c0_i32 = arith.constant 0 : i32
    %c0_i32_0 = arith.constant 0 : i32
    return %arg0, %c0_i32 : i32, i32
  }
}

</mosaic_0001>

<llo_original>
// kernel: tpu_custom_call.1
$region0: #{tpu_custom_call.1}
  #allocation0 [shape = 'u32[]', space=smem, size = 0x4, offset = 0x4, fixed_abs, tag = 'smem constant byte address 0x4 - core index']
  #allocation1 [shape = 'u32[144,128]{1,0:T(1,128)}', space=vmem, size = 0x12000, scoped, tag = 'internal scratch']
  #allocation2 [shape = 'f32[256,16]{1,0:T(8,128)}', space=vmem, size = 0x20000, scoped, tag = 'scratch operand']
  #allocation3 [shape = 'f32[1]{0:T(128)S(6)}', space=smem, size = 0x200, scoped, tag = 'scoped memory for tpu_custom_call.1']
  %s0 = inlined_call_operand.<no memory space> [shape: f32[1], index: 0, kind: input, shape index: {}]
  %s1 = inlined_call_operand.hbm [shape: f32[256,384], index: 1, kind: input, shape index: {}]
  %s2 = inlined_call_operand.hbm [shape: f32[384,256], index: 2, kind: input, shape index: {}]
  %s3 = inlined_call_operand.vmem [shape: f32[384,16], index: 3, kind: input, shape index: {}]
  %s4 = inlined_call_operand.vmem [shape: f32[16,128], index: 4, kind: input, shape index: {}]
  %s5 = inlined_call_operand.hbm [shape: f32[384,128], index: 5, kind: output, shape index: {}]
  %s6 = sld [smem:[#allocation0]]
  $region65: #{tpu_custom_call.1} parent=0
    _
  %s8 = ssub.s32 1, %s6
  %s9 = scalar_select 0, %s8, %s6
  %10 = sst [smem:[#allocation3]] %s0
  $region1: #{tpu_custom_call.1} parent=0
    #allocation4 [shape = 'u8[393216]{0}', space=vmem, size = 0x60000, scoped, tag = 'input window, operand 1, single buffered']
    #allocation5 [shape = 's32[2]{0}', space=sflag, size = 0x8, scoped, tag = 'scoped memory for tpu_custom_call.1']
    #allocation6 [shape = 's32[2]{0}', space=sflag, size = 0x8, scoped, tag = 'scoped memory for tpu_custom_call.1']
    #allocation7 [shape = 'u8[262144]{0}', space=vmem, size = 0x40000, scoped, tag = 'input window, operand 2']
    #allocation8 [shape = 's32[2]{0}', space=sflag, size = 0x8, scoped, tag = 'scoped memory for tpu_custom_call.1']
    #allocation9 [shape = 'u8[131072]{0}', space=vmem, size = 0x20000, scoped, tag = 'output window, operand 0']
    %11 = vsyncpa [#allocation5], 0
    %12 = vsyncpa [#allocation8], 0
    %s13 = scalar_lea.sflag [#allocation8], 1
    %14 = vsyncpa %s13, 0
    %15 = vsyncpa [#allocation6], 0
    %s16 = scalar_lea.sflag [#allocation6], 1
    %17 = vsyncpa %s16, 0
    loop: start=0, step=1, limit=5
    $region2: #{tpu_custom_call.1} parent=1 // loop_pre_header
      _
    $region3: #{tpu_custom_call.1} parent=1 // loop_header
      %s19 = sphi 0, %s23
      %p20 = scmp.ge.s32.totalorder %s19, 5
      %s27 = sphi 0, %s27
      %s29 = sphi 0, %s27
      %s30 = sphi 0, %s29
      %s44 = sphi 0, %s30
      %s48 = sphi 0, %s48
      %s50 = sphi 0, %s48
      %s51 = sphi 0, %s50
      %s65 = sphi 0, %s51
      %s71 = sphi 0, %s73
      %s74 = sphi 0, %s71
      %s75 = sphi 0, %s74
      %s91 = sphi 0, %s75
      %s95 = sphi 0, %s95
      %s97 = sphi 0, %s95
      %s98 = sphi 0, %s97
      %s112 = sphi 0, %s98
      %s116 = sphi 0, %s116
      %s118 = sphi 0, %s116
      %s119 = sphi 0, %s118
      %s133 = sphi 0, %s119
      %s139 = sphi 0, %s141
      %s142 = sphi 0, %s139
      %s143 = sphi 0, %s142
      %s159 = sphi 0, %s143
    $region4: #{tpu_custom_call.1} parent=1 // loop_header_branch
      %22 = sbr.rel (%p20) target = $region8
    $region5: #{tpu_custom_call.1} parent=1 // loop_body
      %s24 = ssub.s32 %s19, 1
      %s25 = ssub.s32 %s19, 2
      %s26 = sadd.s32 %s19, 1
      %s28 = sadd.s32 %s27, 1
      %p31 = scmp.eq.s32.totalorder %s19, 2
      %p32 = scmp.ne.s32.totalorder %s27, %s29
      %p33 = scmp.eq.s32.totalorder %s19, 0
      %p34 = por %p32, %p33
      %p35 = scmp.ne.s32.totalorder %s27, %s29
      %p36 = scmp.eq.s32.totalorder %s24, 2
      %p37 = por %p35, %p36
      %p38 = scmp.ne.s32.totalorder %s29, %s30
      %p39 = scmp.eq.s32.totalorder %s24, 0
      %p40 = por %p38, %p39
      %p41 = scmp.ne.s32.totalorder %s29, %s30
      %p42 = scmp.eq.s32.totalorder %s25, 2
      %p43 = por %p41, %p42
      %p45 = scmp.ne.s32.totalorder %s30, %s44
      %p46 = scmp.eq.s32.totalorder %s25, 0
      %p47 = por %p45, %p46
      %s49 = sadd.s32 %s48, 1
      %p52 = scmp.eq.s32.totalorder %s19, 2
      %p53 = scmp.ne.s32.totalorder %s48, %s50
      %p54 = scmp.eq.s32.totalorder %s19, 0
      %p55 = por %p53, %p54
      %p56 = scmp.ne.s32.totalorder %s48, %s50
      %p57 = scmp.eq.s32.totalorder %s24, 2
      %p58 = por %p56, %p57
      %p59 = scmp.ne.s32.totalorder %s50, %s51
      %p60 = scmp.eq.s32.totalorder %s24, 0
      %p61 = por %p59, %p60
      %p62 = scmp.ne.s32.totalorder %s50, %s51
      %p63 = scmp.eq.s32.totalorder %s25, 2
      %p64 = por %p62, %p63
      %p66 = scmp.ne.s32.totalorder %s51, %s65
      %p67 = scmp.eq.s32.totalorder %s25, 0
      %p68 = por %p66, %p67
      %s69 = ssub.s32 %s19, %s26
      %p70 = scmp.eq.s32.totalorder %s69, 0
      %s72 = sadd.s32 %s71, 1
      %s73 = scalar_select %p70, %s71, %s72
      %p76 = pneg %p70
      %p77 = scmp.eq.s32.totalorder %s19, 2
      %p78 = por %p76, %p77
      %p79 = scmp.ne.s32.totalorder %s71, %s74
      %p80 = scmp.eq.s32.totalorder %s19, 0
      %p81 = por %p79, %p80
      %p82 = scmp.ne.s32.totalorder %s71, %s74
      %p83 = scmp.eq.s32.totalorder %s24, 2
      %p84 = por %p82, %p83
      %p85 = scmp.ne.s32.totalorder %s74, %s75
      %p86 = scmp.eq.s32.totalorder %s24, 0
      %p87 = por %p85, %p86
      %p88 = scmp.ne.s32.totalorder %s74, %s75
      %p89 = scmp.eq.s32.totalorder %s25, 2
      %p90 = por %p88, %p89
      %p92 = scmp.ne.s32.totalorder %s75, %s91
      %p93 = scmp.eq.s32.totalorder %s25, 0
      %p94 = por %p92, %p93
      %s96 = sadd.s32 %s95, 1
      %p99 = scmp.eq.s32.totalorder %s19, 2
      %p100 = scmp.ne.s32.totalorder %s95, %s97
      %p101 = scmp.eq.s32.totalorder %s19, 0
      %p102 = por %p100, %p101
      %p103 = scmp.ne.s32.totalorder %s95, %s97
      %p104 = scmp.eq.s32.totalorder %s24, 2
      %p105 = por %p103, %p104
      %p106 = scmp.ne.s32.totalorder %s97, %s98
      %p107 = scmp.eq.s32.totalorder %s24, 0
      %p108 = por %p106, %p107
      %p109 = scmp.ne.s32.totalorder %s97, %s98
      %p110 = scmp.eq.s32.totalorder %s25, 2
      %p111 = por %p109, %p110
      %p113 = scmp.ne.s32.totalorder %s98, %s112
      %p114 = scmp.eq.s32.totalorder %s25, 0
      %p115 = por %p113, %p114
      %s117 = sadd.s32 %s116, 1
      %p120 = scmp.eq.s32.totalorder %s19, 2
      %p121 = scmp.ne.s32.totalorder %s116, %s118
      %p122 = scmp.eq.s32.totalorder %s19, 0
      %p123 = por %p121, %p122
      %p124 = scmp.ne.s32.totalorder %s116, %s118
      %p125 = scmp.eq.s32.totalorder %s24, 2
      %p126 = por %p124, %p125
      %p127 = scmp.ne.s32.totalorder %s118, %s119
      %p128 = scmp.eq.s32.totalorder %s24, 0
      %p129 = por %p127, %p128
      %p130 = scmp.ne.s32.totalorder %s118, %s119
      %p131 = scmp.eq.s32.totalorder %s25, 2
      %p132 = por %p130, %p131
      %p134 = scmp.ne.s32.totalorder %s119, %s133
      %p135 = scmp.eq.s32.totalorder %s25, 0
      %p136 = por %p134, %p135
      %s137 = ssub.s32 %s19, %s26
      %p138 = scmp.eq.s32.totalorder %s137, 0
      %s140 = sadd.s32 %s139, 1
      %s141 = scalar_select %p138, %s139, %s140
      %p144 = pneg %p138
      %p145 = scmp.eq.s32.totalorder %s19, 2
      %p146 = por %p144, %p145
      %p147 = scmp.ne.s32.totalorder %s139, %s142
      %p148 = scmp.eq.s32.totalorder %s19, 0
      %p149 = por %p147, %p148
      %p150 = scmp.ne.s32.totalorder %s139, %s142
      %p151 = scmp.eq.s32.totalorder %s24, 2
      %p152 = por %p150, %p151
      %p153 = scmp.ne.s32.totalorder %s142, %s143
      %p154 = scmp.eq.s32.totalorder %s24, 0
      %p155 = por %p153, %p154
      %p156 = scmp.ne.s32.totalorder %s142, %s143
      %p157 = scmp.eq.s32.totalorder %s25, 2
      %p158 = por %p156, %p157
      %p160 = scmp.ne.s32.totalorder %s143, %s159
      %p161 = scmp.eq.s32.totalorder %s25, 0
      %p162 = por %p160, %p161
      %p163 = scmp.le.s32.totalorder 1, %s19
      %p164 = scmp.lt.s32.totalorder %s19, 4
      %p165 = pnand %p163, %p164
      %p166 = pneg %p165
      // Predicated region
      $region9: #{tpu_custom_call.1} parent=5 // pred_check
        _
      $region10: #{tpu_custom_call.1} parent=5 // pred_check_branch
        %168 = sbr.rel (%p165) target = $region12
      $region11: #{tpu_custom_call.1} parent=5 // pred_region
        %s169 = ssub.s32 %s19, 1
        // Predicated region
        $region13: #{tpu_custom_call.1} parent=11 // pred_check
          %p170 = pneg %p40
        $region14: #{tpu_custom_call.1} parent=11 // pred_check_branch
          %172 = sbr.rel (%p170) target = $region16
        $region15: #{tpu_custom_call.1} parent=11 // pred_region
          _
        $region16: #{tpu_custom_call.1} parent=11 // pred_fallthru
          _
        // Predicated region
        $region17: #{tpu_custom_call.1} parent=11 // pred_check
          %p173 = pneg %p61
        $region18: #{tpu_custom_call.1} parent=11 // pred_check_branch
          %175 = sbr.rel (%p173) target = $region20
        $region19: #{tpu_custom_call.1} parent=11 // pred_region
          %s177 = ssub.s32 12288, 12288
          %178 = vsyncadd [#allocation5], %s177
          %s179 = sshll.u32 [#allocation4], 4
          %s180 = int_to_ptr.vmem [resolvable:$true] %s179
          %185 = dma.hbm_to_vmem [thread:$0]  %s1, 12288, %s180, [#allocation5], 384, 384, 24
        $region20: #{tpu_custom_call.1} parent=11 // pred_fallthru
          _
        // Predicated region
        $region21: #{tpu_custom_call.1} parent=11 // pred_check
          %p186 = pneg %p108
        $region22: #{tpu_custom_call.1} parent=11 // pred_check_branch
          %188 = sbr.rel (%p186) target = $region24
        $region23: #{tpu_custom_call.1} parent=11 // pred_region
          _
        $region24: #{tpu_custom_call.1} parent=11 // pred_fallthru
          _
        // Predicated region
        $region25: #{tpu_custom_call.1} parent=11 // pred_check
          %p189 = pneg %p129
        $region26: #{tpu_custom_call.1} parent=11 // pred_check_branch
          %191 = sbr.rel (%p189) target = $region28
        $region27: #{tpu_custom_call.1} parent=11 // pred_region
          _
        $region28: #{tpu_custom_call.1} parent=11 // pred_fallthru
          _
      $region12: #{tpu_custom_call.1} parent=5 // pred_fallthru
        _
      %p192 = scmp.lt.s32.totalorder %s19, 3
      // Predicated region
      $region29: #{tpu_custom_call.1} parent=5 // pred_check
        %p193 = pneg %p192
      $region30: #{tpu_custom_call.1} parent=5 // pred_check_branch
        %195 = sbr.rel (%p193) target = $region32
      $region31: #{tpu_custom_call.1} parent=5 // pred_region
        // Predicated region
        $region33: #{tpu_custom_call.1} parent=31 // pred_check
          %p196 = pneg %p81
        $region34: #{tpu_custom_call.1} parent=31 // pred_check_branch
          %198 = sbr.rel (%p196) target = $region36
        $region35: #{tpu_custom_call.1} parent=31 // pred_region
          %s199 = sand.u32 %s71, 1
          %s200 = scalar_lea.sflag [#allocation8], %s199
          %s201 = sand.u32 %s71, 1
          %s202 = smul.addr %s201, 256
          %s203 = scalar_lea.vmem [#allocation7], %s202
          %s204 = smul.u32 16, %s19
          %s206 = ssub.s32 4096, 4096
          %207 = vsyncadd %s200, %s206
          %s208 = smul.addr %s204, 2
          %s209 = smul.addr %s208, 128
          %s210 = scalar_lea.hbm %s2, %s209
          %s211 = sshll.u32 %s203, 4
          %s212 = int_to_ptr.vmem [resolvable:$true] %s211
          %217 = dma.hbm_to_vmem [thread:$0]  %s210, 4096, %s212, %s200, 256, 256, 16
        $region36: #{tpu_custom_call.1} parent=31 // pred_fallthru
          _
      $region32: #{tpu_custom_call.1} parent=5 // pred_fallthru
        _
      %p218 = scmp.le.s32.totalorder 1, %s19
      %p219 = scmp.lt.s32.totalorder %s19, 4
      %p220 = pnand %p218, %p219
      %p221 = pneg %p220
      // Predicated region
      $region37: #{tpu_custom_call.1} parent=5 // pred_check
        _
      $region38: #{tpu_custom_call.1} parent=5 // pred_check_branch
        %223 = sbr.rel (%p220) target = $region40
      $region39: #{tpu_custom_call.1} parent=5 // pred_region
        %s224 = ssub.s32 %s19, 1
        // Predicated region
        $region41: #{tpu_custom_call.1} parent=39 // pred_check
          %p225 = pneg %p61
        $region42: #{tpu_custom_call.1} parent=39 // pred_check_branch
          %227 = sbr.rel (%p225) target = $region44
        $region43: #{tpu_custom_call.1} parent=39 // pred_region
          %228 = dma.done [#allocation5], 12288
        $region44: #{tpu_custom_call.1} parent=39 // pred_fallthru
          _
        %s229 = sand.u32 %s74, 1
        %s230 = scalar_lea.sflag [#allocation8], %s229
        %s231 = sand.u32 %s74, 1
        %s232 = smul.addr %s231, 256
        %s233 = scalar_lea.vmem [#allocation7], %s232
        // Predicated region
        $region45: #{tpu_custom_call.1} parent=39 // pred_check
          %p234 = pneg %p87
        $region46: #{tpu_custom_call.1} parent=39 // pred_check_branch
          %236 = sbr.rel (%p234) target = $region48
        $region47: #{tpu_custom_call.1} parent=39 // pred_region
          %237 = dma.done %s230, 4096
        $region48: #{tpu_custom_call.1} parent=39 // pred_fallthru
          _
        %p238 = pneg %p40
        %p239 = pneg %p37
        %p240 = pneg %p61
        %p241 = pneg %p58
        %s242 = sand.u32 %s74, 1
        %s243 = scalar_lea.sflag [#allocation8], %s242
        %s244 = sand.u32 %s74, 1
        %s245 = smul.addr %s244, 256
        %s246 = scalar_lea.vmem [#allocation7], %s245
        %p247 = pneg %p87
        %p248 = pneg %p84
        %p249 = pneg %p108
        %p250 = pneg %p105
        %p251 = pneg %p129
        %p252 = pneg %p126
        %p253 = pneg %p155
        %p254 = pneg %p152
        %s255 = sand.u32 %s142, 1
        %s256 = scalar_lea.sflag [#allocation6], %s255
        %s257 = sand.u32 %s142, 1
        %s258 = smul.addr %s257, 128
        %s259 = scalar_lea.vmem [#allocation9], %s258
        %s260 = smul.u32 16, %s24
        %s261 = smul.u32 16, %s24
        %p262 = scmp.eq.s32.totalorder %s24, 0
        // Predicated region
        $region49: #{tpu_custom_call.1} parent=39 // pred_check
          %p263 = pneg %p262
        $region50: #{tpu_custom_call.1} parent=39 // pred_check_branch
          %265 = sbr.rel (%p263) target = $region52
        $region51: #{tpu_custom_call.1} parent=39 // pred_region
          %v266 = vld [vmem:[#allocation4] sm:$0xff]
          %v267 = vld [vmem:[#allocation4 + $0x8] sm:$0xff]
          %v268 = vld [vmem:[#allocation4 + $0x10] sm:$0xff]
          %v269 = vld [vmem:[#allocation4 + $0x18] sm:$0xff]
          %v270 = vld [vmem:[#allocation4 + $0x20] sm:$0xff]
          %v271 = vld [vmem:[#allocation4 + $0x28] sm:$0xff]
          %v272 = vld [vmem:[#allocation4 + $0x30] sm:$0xff]
          %v273 = vld [vmem:[#allocation4 + $0x38] sm:$0xff]
          %v274 = vld [vmem:[#allocation4 + $0x40] sm:$0xff]
          %v275 = vld [vmem:[#allocation4 + $0x48] sm:$0xff]
          %v276 = vld [vmem:[#allocation4 + $0x50] sm:$0xff]
          %v277 = vld [vmem:[#allocation4 + $0x58] sm:$0xff]
          %v278 = vld [vmem:[#allocation4 + $0x60] sm:$0xff]
          %v279 = vld [vmem:[#allocation4 + $0x68] sm:$0xff]
          %v280 = vld [vmem:[#allocation4 + $0x70] sm:$0xff]
          %v281 = vld [vmem:[#allocation4 + $0x78] sm:$0xff]
          %v282 = vld [vmem:[#allocation4 + $0x80] sm:$0xff]
          %v283 = vld [vmem:[#allocation4 + $0x88] sm:$0xff]
          %v284 = vld [vmem:[#allocation4 + $0x90] sm:$0xff]
          %v285 = vld [vmem:[#allocation4 + $0x98] sm:$0xff]
          %v286 = vld [vmem:[#allocation4 + $0xa0] sm:$0xff]
          %v287 = vld [vmem:[#allocation4 + $0xa8] sm:$0xff]
          %v288 = vld [vmem:[#allocation4 + $0xb0] sm:$0xff]
          %v289 = vld [vmem:[#allocation4 + $0xb8] sm:$0xff]
          %v290 = vld [vmem:[#allocation4 + $0xc0] sm:$0xff]
          %v291 = vld [vmem:[#allocation4 + $0xc8] sm:$0xff]
          %v292 = vld [vmem:[#allocation4 + $0xd0] sm:$0xff]
          %v293 = vld [vmem:[#allocation4 + $0xd8] sm:$0xff]
          %v294 = vld [vmem:[#allocation4 + $0xe0] sm:$0xff]
          %v295 = vld [vmem:[#allocation4 + $0xe8] sm:$0xff]
          %v296 = vld [vmem:[#allocation4 + $0xf0] sm:$0xff]
          %v297 = vld [vmem:[#allocation4 + $0xf8] sm:$0xff]
          %v298 = vld [vmem:[#allocation4 + $0x100] sm:$0xff]
          %v299 = vld [vmem:[#allocation4 + $0x108] sm:$0xff]
          %v300 = vld [vmem:[#allocation4 + $0x110] sm:$0xff]
          %v301 = vld [vmem:[#allocation4 + $0x118] sm:$0xff]
          %v302 = vld [vmem:[#allocation4 + $0x120] sm:$0xff]
          %v303 = vld [vmem:[#allocation4 + $0x128] sm:$0xff]
          %v304 = vld [vmem:[#allocation4 + $0x130] sm:$0xff]
          %v305 = vld [vmem:[#allocation4 + $0x138] sm:$0xff]
          %v306 = vld [vmem:[#allocation4 + $0x140] sm:$0xff]
          %v307 = vld [vmem:[#allocation4 + $0x148] sm:$0xff]
          %v308 = vld [vmem:[#allocation4 + $0x150] sm:$0xff]
          %v309 = vld [vmem:[#allocation4 + $0x158] sm:$0xff]
          %v310 = vld [vmem:[#allocation4 + $0x160] sm:$0xff]
          %v311 = vld [vmem:[#allocation4 + $0x168] sm:$0xff]
          %v312 = vld [vmem:[#allocation4 + $0x170] sm:$0xff]
          %v313 = vld [vmem:[#allocation4 + $0x178] sm:$0xff]
          %v314 = vld [vmem:[#allocation4 + $0x180] sm:$0xff]
          %v315 = vld [vmem:[#allocation4 + $0x188] sm:$0xff]
          %v316 = vld [vmem:[#allocation4 + $0x190] sm:$0xff]
          %v317 = vld [vmem:[#allocation4 + $0x198] sm:$0xff]
          %v318 = vld [vmem:[#allocation4 + $0x1a0] sm:$0xff]
          %v319 = vld [vmem:[#allocation4 + $0x1a8] sm:$0xff]
          %v320 = vld [vmem:[#allocation4 + $0x1b0] sm:$0xff]
          %v321 = vld [vmem:[#allocation4 + $0x1b8] sm:$0xff]
          %v322 = vld [vmem:[#allocation4 + $0x1c0] sm:$0xff]
          %v323 = vld [vmem:[#allocation4 + $0x1c8] sm:$0xff]
          %v324 = vld [vmem:[#allocation4 + $0x1d0] sm:$0xff]
          %v325 = vld [vmem:[#allocation4 + $0x1d8] sm:$0xff]
          %v326 = vld [vmem:[#allocation4 + $0x1e0] sm:$0xff]
          %v327 = vld [vmem:[#allocation4 + $0x1e8] sm:$0xff]
          %v328 = vld [vmem:[#allocation4 + $0x1f0] sm:$0xff]
          %v329 = vld [vmem:[#allocation4 + $0x1f8] sm:$0xff]
          %v330 = vld [vmem:[#allocation4 + $0x200] sm:$0xff]
          %v331 = vld [vmem:[#allocation4 + $0x208] sm:$0xff]
          %v332 = vld [vmem:[#allocation4 + $0x210] sm:$0xff]
          %v333 = vld [vmem:[#allocation4 + $0x218] sm:$0xff]
          %v334 = vld [vmem:[#allocation4 + $0x220] sm:$0xff]
          %v335 = vld [vmem:[#allocation4 + $0x228] sm:$0xff]
          %v336 = vld [vmem:[#allocation4 + $0x230] sm:$0xff]
          %v337 = vld [vmem:[#allocation4 + $0x238] sm:$0xff]
          %v338 = vld [vmem:[#allocation4 + $0x240] sm:$0xff]
          %v339 = vld [vmem:[#allocation4 + $0x248] sm:$0xff]
          %v340 = vld [vmem:[#allocation4 + $0x250] sm:$0xff]
          %v341 = vld [vmem:[#allocation4 + $0x258] sm:$0xff]
          %v342 = vld [vmem:[#allocation4 + $0x260] sm:$0xff]
          %v343 = vld [vmem:[#allocation4 + $0x268] sm:$0xff]
          %v344 = vld [vmem:[#allocation4 + $0x270] sm:$0xff]
          %v345 = vld [vmem:[#allocation4 + $0x278] sm:$0xff]
          %v346 = vld [vmem:[#allocation4 + $0x280] sm:$0xff]
          %v347 = vld [vmem:[#allocation4 + $0x288] sm:$0xff]
          %v348 = vld [vmem:[#allocation4 + $0x290] sm:$0xff]
          %v349 = vld [vmem:[#allocation4 + $0x298] sm:$0xff]
          %v350 = vld [vmem:[#allocation4 + $0x2a0] sm:$0xff]
          %v351 = vld [vmem:[#allocation4 + $0x2a8] sm:$0xff]
          %v352 = vld [vmem:[#allocation4 + $0x2b0] sm:$0xff]
          %v353 = vld [vmem:[#allocation4 + $0x2b8] sm:$0xff]
          %v354 = vld [vmem:[#allocation4 + $0x2c0] sm:$0xff]
          %v355 = vld [vmem:[#allocation4 + $0x2c8] sm:$0xff]
          %v356 = vld [vmem:[#allocation4 + $0x2d0] sm:$0xff]
          %v357 = vld [vmem:[#allocation4 + $0x2d8] sm:$0xff]
          %v358 = vld [vmem:[#allocation4 + $0x2e0] sm:$0xff]
          %v359 = vld [vmem:[#allocation4 + $0x2e8] sm:$0xff]
          %v360 = vld [vmem:[#allocation4 + $0x2f0] sm:$0xff]
          %v361 = vld [vmem:[#allocation4 + $0x2f8] sm:$0xff]
          %v362 = vld [vmem:[%s3] sm:$0xff]
          %v363 = vld [vmem:[%s3 + $0x8] sm:$0xff]
          %v364 = vld [vmem:[%s3 + $0x10] sm:$0xff]
          %v365 = vld [vmem:[%s3 + $0x18] sm:$0xff]
          %v366 = vld [vmem:[%s3 + $0x20] sm:$0xff]
          %v367 = vld [vmem:[%s3 + $0x28] sm:$0xff]
          %v368 = vld [vmem:[%s3 + $0x30] sm:$0xff]
          %v369 = vld [vmem:[%s3 + $0x38] sm:$0xff]
          %v370 = vld [vmem:[%s3 + $0x40] sm:$0xff]
          %v371 = vld [vmem:[%s3 + $0x48] sm:$0xff]
          %v372 = vld [vmem:[%s3 + $0x50] sm:$0xff]
          %v373 = vld [vmem:[%s3 + $0x58] sm:$0xff]
          %v374 = vld [vmem:[%s3 + $0x60] sm:$0xff]
          %v375 = vld [vmem:[%s3 + $0x68] sm:$0xff]
          %v376 = vld [vmem:[%s3 + $0x70] sm:$0xff]
          %v377 = vld [vmem:[%s3 + $0x78] sm:$0xff]
          %v378 = vld [vmem:[%s3 + $0x80] sm:$0xff]
          %v379 = vld [vmem:[%s3 + $0x88] sm:$0xff]
          %v380 = vld [vmem:[%s3 + $0x90] sm:$0xff]
          %v381 = vld [vmem:[%s3 + $0x98] sm:$0xff]
          %v382 = vld [vmem:[%s3 + $0xa0] sm:$0xff]
          %v383 = vld [vmem:[%s3 + $0xa8] sm:$0xff]
          %v384 = vld [vmem:[%s3 + $0xb0] sm:$0xff]
          %v385 = vld [vmem:[%s3 + $0xb8] sm:$0xff]
          %v386 = vld [vmem:[%s3 + $0xc0] sm:$0xff]
          %v387 = vld [vmem:[%s3 + $0xc8] sm:$0xff]
          %v388 = vld [vmem:[%s3 + $0xd0] sm:$0xff]
          %v389 = vld [vmem:[%s3 + $0xd8] sm:$0xff]
          %v390 = vld [vmem:[%s3 + $0xe0] sm:$0xff]
          %v391 = vld [vmem:[%s3 + $0xe8] sm:$0xff]
          %v392 = vld [vmem:[%s3 + $0xf0] sm:$0xff]
          %v393 = vld [vmem:[%s3 + $0xf8] sm:$0xff]
          %v394 = vld [vmem:[%s3 + $0x100] sm:$0xff]
          %v395 = vld [vmem:[%s3 + $0x108] sm:$0xff]
          %v396 = vld [vmem:[%s3 + $0x110] sm:$0xff]
          %v397 = vld [vmem:[%s3 + $0x118] sm:$0xff]
          %v398 = vld [vmem:[%s3 + $0x120] sm:$0xff]
          %v399 = vld [vmem:[%s3 + $0x128] sm:$0xff]
          %v400 = vld [vmem:[%s3 + $0x130] sm:$0xff]
          %v401 = vld [vmem:[%s3 + $0x138] sm:$0xff]
          %v402 = vld [vmem:[%s3 + $0x140] sm:$0xff]
          %v403 = vld [vmem:[%s3 + $0x148] sm:$0xff]
          %v404 = vld [vmem:[%s3 + $0x150] sm:$0xff]
          %v405 = vld [vmem:[%s3 + $0x158] sm:$0xff]
          %v406 = vld [vmem:[%s3 + $0x160] sm:$0xff]
          %v407 = vld [vmem:[%s3 + $0x168] sm:$0xff]
          %v408 = vld [vmem:[%s3 + $0x170] sm:$0xff]
          %v409 = vld [vmem:[%s3 + $0x178] sm:$0xff]
          %410 = vmatprep.subr.mxu0 0.0
          %411 = vmatpush1.msra.mxu0 %v377
          %412 = vmatprep.subr.mxu0 0.0
          %413 = vmatpush1.msra.mxu0 %v376
          %414 = vmatprep.subr.mxu0 0.0
          %415 = vmatpush1.msra.mxu0 %v375
          %416 = vmatprep.subr.mxu0 0.0
          %417 = vmatpush1.msra.mxu0 %v374
          %418 = vmatprep.subr.mxu0 0.0
          %419 = vmatpush1.msra.mxu0 %v373
          %420 = vmatprep.subr.mxu0 0.0
          %421 = vmatpush1.msra.mxu0 %v372
          %422 = vmatprep.subr.mxu0 0.0
          %423 = vmatpush1.msra.mxu0 %v371
          %424 = vmatprep.subr.mxu0 0.0
          %425 = vmatpush1.msra.mxu0 %v370
          %426 = vmatprep.subr.mxu0 0.0
          %427 = vmatpush1.msra.mxu0 %v369
          %428 = vmatprep.subr.mxu0 0.0
          %429 = vmatpush1.msra.mxu0 %v368
          %430 = vmatprep.subr.mxu0 0.0
          %431 = vmatpush1.msra.mxu0 %v367
          %432 = vmatprep.subr.mxu0 0.0
          %433 = vmatpush1.msra.mxu0 %v366
          %434 = vmatprep.subr.mxu0 0.0
          %435 = vmatpush1.msra.mxu0 %v365
          %436 = vmatprep.subr.mxu0 0.0
          %437 = vmatpush1.msra.mxu0 %v364
          %438 = vmatprep.subr.mxu0 0.0
          %439 = vmatpush1.msra.mxu0 %v363
          %440 = vmatprep.subr.mxu0 0.0
          %441 = vmatpush1.msra.mxu0 %v362
          %442 = vmatprep.subr.mxu0 0.0
          %443 = vmatpush2.msra.mxu0 %v393
          %444 = vmatprep.subr.mxu0 0.0
          %445 = vmatpush2.msra.mxu0 %v392
          %446 = vmatprep.subr.mxu0 0.0
          %447 = vmatpush2.msra.mxu0 %v391
          %448 = vmatprep.subr.mxu0 0.0
          %449 = vmatpush2.msra.mxu0 %v390
          %450 = vmatprep.subr.mxu0 0.0
          %451 = vmatpush2.msra.mxu0 %v389
          %452 = vmatprep.subr.mxu0 0.0
          %453 = vmatpush2.msra.mxu0 %v388
          %454 = vmatprep.subr.mxu0 0.0
          %455 = vmatpush2.msra.mxu0 %v387
          %456 = vmatprep.subr.mxu0 0.0
          %457 = vmatpush2.msra.mxu0 %v386
          %458 = vmatprep.subr.mxu0 0.0
          %459 = vmatpush2.msra.mxu0 %v385
          %460 = vmatprep.subr.mxu0 0.0
          %461 = vmatpush2.msra.mxu0 %v384
          %462 = vmatprep.subr.mxu0 0.0
          %463 = vmatpush2.msra.mxu0 %v383
          %464 = vmatprep.subr.mxu0 0.0
          %465 = vmatpush2.msra.mxu0 %v382
          %466 = vmatprep.subr.mxu0 0.0
          %467 = vmatpush2.msra.mxu0 %v381
          %468 = vmatprep.subr.mxu0 0.0
          %469 = vmatpush2.msra.mxu0 %v380
          %470 = vmatprep.subr.mxu0 0.0
          %471 = vmatpush2.msra.mxu0 %v379
          %472 = vmatprep.subr.mxu0 0.0
          %473 = vmatpush2.msra.mxu0 %v378
          %474 = vmatprep.mubr.f32.mxu0 %v267
          %475 = vmatmul.mubr.f32.gmra.mxu0 %v266
          %v476 = vpop.f32.mrf.mxu0
          %v477 = vadd.f32 0.0, %v476
          %v478 = vpop.f32.mrf.mxu0
          %479 = vmatprep.mubr.f32.mxu0 %v270
          %480 = vmatmul.mubr.f32.gmra.mxu0 %v269
          %v481 = vpop.f32.mrf.mxu0
          %v482 = vadd.f32 0.0, %v481
          %v483 = vpop.f32.mrf.mxu0
          %484 = vmatprep.mubr.f32.mxu0 %v273
          %485 = vmatmul.mubr.f32.gmra.mxu0 %v272
          %v486 = vpop.f32.mrf.mxu0
          %v487 = vadd.f32 0.0, %v486
          %v488 = vpop.f32.mrf.mxu0
          %489 = vmatprep.mubr.f32.mxu0 %v276
          %490 = vmatmul.mubr.f32.gmra.mxu0 %v275
          %v491 = vpop.f32.mrf.mxu0
          %v492 = vadd.f32 0.0, %v491
          %v493 = vpop.f32.mrf.mxu0
          %494 = vmatprep.mubr.f32.mxu0 %v279
          %495 = vmatmul.mubr.f32.gmra.mxu0 %v278
          %v496 = vpop.f32.mrf.mxu0
          %v497 = vadd.f32 0.0, %v496
          %v498 = vpop.f32.mrf.mxu0
          %499 = vmatprep.mubr.f32.mxu0 %v282
          %500 = vmatmul.mubr.f32.gmra.mxu0 %v281
          %v501 = vpop.f32.mrf.mxu0
          %v502 = vadd.f32 0.0, %v501
          %v503 = vpop.f32.mrf.mxu0
          %504 = vmatprep.mubr.f32.mxu0 %v285
          %505 = vmatmul.mubr.f32.gmra.mxu0 %v284
          %v506 = vpop.f32.mrf.mxu0
          %v507 = vadd.f32 0.0, %v506
          %v508 = vpop.f32.mrf.mxu0
          %509 = vmatprep.mubr.f32.mxu0 %v288
          %510 = vmatmul.mubr.f32.gmra.mxu0 %v287
          %v511 = vpop.f32.mrf.mxu0
          %v512 = vadd.f32 0.0, %v511
          %v513 = vpop.f32.mrf.mxu0
          %514 = vmatprep.mubr.f32.mxu0 %v291
          %515 = vmatmul.mubr.f32.gmra.mxu0 %v290
          %v516 = vpop.f32.mrf.mxu0
          %v517 = vadd.f32 0.0, %v516
          %v518 = vpop.f32.mrf.mxu0
          %519 = vmatprep.mubr.f32.mxu0 %v294
          %520 = vmatmul.mubr.f32.gmra.mxu0 %v293
          %v521 = vpop.f32.mrf.mxu0
          %v522 = vadd.f32 0.0, %v521
          %v523 = vpop.f32.mrf.mxu0
          %524 = vmatprep.mubr.f32.mxu0 %v297
          %525 = vmatmul.mubr.f32.gmra.mxu0 %v296
          %v526 = vpop.f32.mrf.mxu0
          %v527 = vadd.f32 0.0, %v526
          %v528 = vpop.f32.mrf.mxu0
          %529 = vmatprep.mubr.f32.mxu0 %v300
          %530 = vmatmul.mubr.f32.gmra.mxu0 %v299
          %v531 = vpop.f32.mrf.mxu0
          %v532 = vadd.f32 0.0, %v531
          %v533 = vpop.f32.mrf.mxu0
          %534 = vmatprep.mubr.f32.mxu0 %v303
          %535 = vmatmul.mubr.f32.gmra.mxu0 %v302
          %v536 = vpop.f32.mrf.mxu0
          %v537 = vadd.f32 0.0, %v536
          %v538 = vpop.f32.mrf.mxu0
          %539 = vmatprep.mubr.f32.mxu0 %v306
          %540 = vmatmul.mubr.f32.gmra.mxu0 %v305
          %v541 = vpop.f32.mrf.mxu0
          %v542 = vadd.f32 0.0, %v541
          %v543 = vpop.f32.mrf.mxu0
          %544 = vmatprep.mubr.f32.mxu0 %v309
          %545 = vmatmul.mubr.f32.gmra.mxu0 %v308
          %v546 = vpop.f32.mrf.mxu0
          %v547 = vadd.f32 0.0, %v546
          %v548 = vpop.f32.mrf.mxu0
          %549 = vmatprep.mubr.f32.mxu0 %v312
          %550 = vmatmul.mubr.f32.gmra.mxu0 %v311
          %v551 = vpop.f32.mrf.mxu0
          %v552 = vadd.f32 0.0, %v551
          %v553 = vpop.f32.mrf.mxu0
          %554 = vmatprep.mubr.f32.mxu0 %v315
          %555 = vmatmul.mubr.f32.gmra.mxu0 %v314
          %v556 = vpop.f32.mrf.mxu0
          %v557 = vadd.f32 0.0, %v556
          %v558 = vpop.f32.mrf.mxu0
          %559 = vmatprep.mubr.f32.mxu0 %v318
          %560 = vmatmul.mubr.f32.gmra.mxu0 %v317
          %v561 = vpop.f32.mrf.mxu0
          %v562 = vadd.f32 0.0, %v561
          %v563 = vpop.f32.mrf.mxu0
          %564 = vmatprep.mubr.f32.mxu0 %v321
          %565 = vmatmul.mubr.f32.gmra.mxu0 %v320
          %v566 = vpop.f32.mrf.mxu0
          %v567 = vadd.f32 0.0, %v566
          %v568 = vpop.f32.mrf.mxu0
          %569 = vmatprep.mubr.f32.mxu0 %v324
          %570 = vmatmul.mubr.f32.gmra.mxu0 %v323
          %v571 = vpop.f32.mrf.mxu0
          %v572 = vadd.f32 0.0, %v571
          %v573 = vpop.f32.mrf.mxu0
          %574 = vmatprep.mubr.f32.mxu0 %v327
          %575 = vmatmul.mubr.f32.gmra.mxu0 %v326
          %v576 = vpop.f32.mrf.mxu0
          %v577 = vadd.f32 0.0, %v576
          %v578 = vpop.f32.mrf.mxu0
          %579 = vmatprep.mubr.f32.mxu0 %v330
          %580 = vmatmul.mubr.f32.gmra.mxu0 %v329
          %v581 = vpop.f32.mrf.mxu0
          %v582 = vadd.f32 0.0, %v581
          %v583 = vpop.f32.mrf.mxu0
          %584 = vmatprep.mubr.f32.mxu0 %v333
          %585 = vmatmul.mubr.f32.gmra.mxu0 %v332
          %v586 = vpop.f32.mrf.mxu0
          %v587 = vadd.f32 0.0, %v586
          %v588 = vpop.f32.mrf.mxu0
          %589 = vmatprep.mubr.f32.mxu0 %v336
          %590 = vmatmul.mubr.f32.gmra.mxu0 %v335
          %v591 = vpop.f32.mrf.mxu0
          %v592 = vadd.f32 0.0, %v591
          %v593 = vpop.f32.mrf.mxu0
          %594 = vmatprep.mubr.f32.mxu0 %v339
          %595 = vmatmul.mubr.f32.gmra.mxu0 %v338
          %v596 = vpop.f32.mrf.mxu0
          %v597 = vadd.f32 0.0, %v596
          %v598 = vpop.f32.mrf.mxu0
          %599 = vmatprep.mubr.f32.mxu0 %v342
          %600 = vmatmul.mubr.f32.gmra.mxu0 %v341
          %v601 = vpop.f32.mrf.mxu0
          %v602 = vadd.f32 0.0, %v601
          %v603 = vpop.f32.mrf.mxu0
          %604 = vmatprep.mubr.f32.mxu0 %v345
          %605 = vmatmul.mubr.f32.gmra.mxu0 %v344
          %v606 = vpop.f32.mrf.mxu0
          %v607 = vadd.f32 0.0, %v606
          %v608 = vpop.f32.mrf.mxu0
          %609 = vmatprep.mubr.f32.mxu0 %v348
          %610 = vmatmul.mubr.f32.gmra.mxu0 %v347
          %v611 = vpop.f32.mrf.mxu0
          %v612 = vadd.f32 0.0, %v611
          %v613 = vpop.f32.mrf.mxu0
          %614 = vmatprep.mubr.f32.mxu0 %v351
          %615 = vmatmul.mubr.f32.gmra.mxu0 %v350
          %v616 = vpop.f32.mrf.mxu0
          %v617 = vadd.f32 0.0, %v616
          %v618 = vpop.f32.mrf.mxu0
          %619 = vmatprep.mubr.f32.mxu0 %v354
          %620 = vmatmul.mubr.f32.gmra.mxu0 %v353
          %v621 = vpop.f32.mrf.mxu0
          %v622 = vadd.f32 0.0, %v621
          %v623 = vpop.f32.mrf.mxu0
          %624 = vmatprep.mubr.f32.mxu0 %v357
          %625 = vmatmul.mubr.f32.gmra.mxu0 %v356
          %v626 = vpop.f32.mrf.mxu0
          %v627 = vadd.f32 0.0, %v626
          %v628 = vpop.f32.mrf.mxu0
          %629 = vmatprep.mubr.f32.mxu0 %v360
          %630 = vmatmul.mubr.f32.gmra.mxu0 %v359
          %v631 = vpop.f32.mrf.mxu0
          %v632 = vadd.f32 0.0, %v631
          %v633 = vpop.f32.mrf.mxu0
          %634 = vdwg.mxu0
          %635 = vmatprep.subr.mxu0 0.0
          %636 = vmatpush1.msra.mxu0 %v409
          %637 = vmatprep.subr.mxu0 0.0
          %638 = vmatpush1.msra.mxu0 %v408
          %639 = vmatprep.subr.mxu0 0.0
          %640 = vmatpush1.msra.mxu0 %v407
          %641 = vmatprep.subr.mxu0 0.0
          %642 = vmatpush1.msra.mxu0 %v406
          %643 = vmatprep.subr.mxu0 0.0
          %644 = vmatpush1.msra.mxu0 %v405
          %645 = vmatprep.subr.mxu0 0.0
          %646 = vmatpush1.msra.mxu0 %v404
          %647 = vmatprep.subr.mxu0 0.0
          %648 = vmatpush1.msra.mxu0 %v403
          %649 = vmatprep.subr.mxu0 0.0
          %650 = vmatpush1.msra.mxu0 %v402
          %651 = vmatprep.subr.mxu0 0.0
          %652 = vmatpush1.msra.mxu0 %v401
          %653 = vmatprep.subr.mxu0 0.0
          %654 = vmatpush1.msra.mxu0 %v400
          %655 = vmatprep.subr.mxu0 0.0
          %656 = vmatpush1.msra.mxu0 %v399
          %657 = vmatprep.subr.mxu0 0.0
          %658 = vmatpush1.msra.mxu0 %v398
          %659 = vmatprep.subr.mxu0 0.0
          %660 = vmatpush1.msra.mxu0 %v397
          %661 = vmatprep.subr.mxu0 0.0
          %662 = vmatpush1.msra.mxu0 %v396
          %663 = vmatprep.subr.mxu0 0.0
          %664 = vmatpush1.msra.mxu0 %v395
          %665 = vmatprep.subr.mxu0 0.0
          %666 = vmatpush1.msra.mxu0 %v394
          %667 = vmatprep.subr.mxu0 0.0
          %668 = vmatpush2.msra.mxu0 0.0
          %669 = vmatprep.subr.mxu0 0.0
          %670 = vmatpush2.msra.mxu0 0.0
          %671 = vmatprep.subr.mxu0 0.0
          %672 = vmatpush2.msra.mxu0 0.0
          %673 = vmatprep.subr.mxu0 0.0
          %674 = vmatpush2.msra.mxu0 0.0
          %675 = vmatprep.subr.mxu0 0.0
          %676 = vmatpush2.msra.mxu0 0.0
          %677 = vmatprep.subr.mxu0 0.0
          %678 = vmatpush2.msra.mxu0 0.0
          %679 = vmatprep.subr.mxu0 0.0
          %680 = vmatpush2.msra.mxu0 0.0
          %681 = vmatprep.subr.mxu0 0.0
          %682 = vmatpush2.msra.mxu0 0.0
          %683 = vmatprep.subr.mxu0 0.0
          %684 = vmatpush2.msra.mxu0 0.0
          %685 = vmatprep.subr.mxu0 0.0
          %686 = vmatpush2.msra.mxu0 0.0
          %687 = vmatprep.subr.mxu0 0.0
          %688 = vmatpush2.msra.mxu0 0.0
          %689 = vmatprep.subr.mxu0 0.0
          %690 = vmatpush2.msra.mxu0 0.0
          %691 = vmatprep.subr.mxu0 0.0
          %692 = vmatpush2.msra.mxu0 0.0
          %693 = vmatprep.subr.mxu0 0.0
          %694 = vmatpush2.msra.mxu0 0.0
          %695 = vmatprep.subr.mxu0 0.0
          %696 = vmatpush2.msra.mxu0 0.0
          %697 = vmatprep.subr.mxu0 0.0
          %698 = vmatpush2.msra.mxu0 0.0
          %699 = vmatprep.mubr.f32.mxu0 0.0
          %700 = vmatmul.mubr.f32.gmra.mxu0 %v268
          %v701 = vpop.f32.mrf.mxu0
          %v702 = vadd.f32 %v477, %v701
          %v703 = vpop.f32.mrf.mxu0
          %704 = vmatprep.mubr.f32.mxu0 0.0
          %705 = vmatmul.mubr.f32.gmra.mxu0 %v271
          %v706 = vpop.f32.mrf.mxu0
          %v707 = vadd.f32 %v482, %v706
          %v708 = vpop.f32.mrf.mxu0
          %709 = vmatprep.mubr.f32.mxu0 0.0
          %710 = vmatmul.mubr.f32.gmra.mxu0 %v274
          %v711 = vpop.f32.mrf.mxu0
          %v712 = vadd.f32 %v487, %v711
          %v713 = vpop.f32.mrf.mxu0
          %714 = vmatprep.mubr.f32.mxu0 0.0
          %715 = vmatmul.mubr.f32.gmra.mxu0 %v277
          %v716 = vpop.f32.mrf.mxu0
          %v717 = vadd.f32 %v492, %v716
          %v718 = vpop.f32.mrf.mxu0
          %719 = vmatprep.mubr.f32.mxu0 0.0
          %720 = vmatmul.mubr.f32.gmra.mxu0 %v280
          %v721 = vpop.f32.mrf.mxu0
          %v722 = vadd.f32 %v497, %v721
          %v723 = vpop.f32.mrf.mxu0
          %724 = vmatprep.mubr.f32.mxu0 0.0
          %725 = vmatmul.mubr.f32.gmra.mxu0 %v283
          %v726 = vpop.f32.mrf.mxu0
          %v727 = vadd.f32 %v502, %v726
          %v728 = vpop.f32.mrf.mxu0
          %729 = vmatprep.mubr.f32.mxu0 0.0
          %730 = vmatmul.mubr.f32.gmra.mxu0 %v286
          %v731 = vpop.f32.mrf.mxu0
          %v732 = vadd.f32 %v507, %v731
          %v733 = vpop.f32.mrf.mxu0
          %734 = vmatprep.mubr.f32.mxu0 0.0
          %735 = vmatmul.mubr.f32.gmra.mxu0 %v289
          %v736 = vpop.f32.mrf.mxu0
          %v737 = vadd.f32 %v512, %v736
          %v738 = vpop.f32.mrf.mxu0
          %739 = vmatprep.mubr.f32.mxu0 0.0
          %740 = vmatmul.mubr.f32.gmra.mxu0 %v292
          %v741 = vpop.f32.mrf.mxu0
          %v742 = vadd.f32 %v517, %v741
          %v743 = vpop.f32.mrf.mxu0
          %744 = vmatprep.mubr.f32.mxu0 0.0
          %745 = vmatmul.mubr.f32.gmra.mxu0 %v295
          %v746 = vpop.f32.mrf.mxu0
          %v747 = vadd.f32 %v522, %v746
          %v748 = vpop.f32.mrf.mxu0
          %749 = vmatprep.mubr.f32.mxu0 0.0
          %750 = vmatmul.mubr.f32.gmra.mxu0 %v298
          %v751 = vpop.f32.mrf.mxu0
          %v752 = vadd.f32 %v527, %v751
          %v753 = vpop.f32.mrf.mxu0
          %754 = vmatprep.mubr.f32.mxu0 0.0
          %755 = vmatmul.mubr.f32.gmra.mxu0 %v301
          %v756 = vpop.f32.mrf.mxu0
          %v757 = vadd.f32 %v532, %v756
          %v758 = vpop.f32.mrf.mxu0
          %759 = vmatprep.mubr.f32.mxu0 0.0
          %760 = vmatmul.mubr.f32.gmra.mxu0 %v304
          %v761 = vpop.f32.mrf.mxu0
          %v762 = vadd.f32 %v537, %v761
          %v763 = vpop.f32.mrf.mxu0
          %764 = vmatprep.mubr.f32.mxu0 0.0
          %765 = vmatmul.mubr.f32.gmra.mxu0 %v307
          %v766 = vpop.f32.mrf.mxu0
          %v767 = vadd.f32 %v542, %v766
          %v768 = vpop.f32.mrf.mxu0
          %769 = vmatprep.mubr.f32.mxu0 0.0
          %770 = vmatmul.mubr.f32.gmra.mxu0 %v310
          %v771 = vpop.f32.mrf.mxu0
          %v772 = vadd.f32 %v547, %v771
          %v773 = vpop.f32.mrf.mxu0
          %774 = vmatprep.mubr.f32.mxu0 0.0
          %775 = vmatmul.mubr.f32.gmra.mxu0 %v313
          %v776 = vpop.f32.mrf.mxu0
          %v777 = vadd.f32 %v552, %v776
          %v778 = vpop.f32.mrf.mxu0
          %779 = vmatprep.mubr.f32.mxu0 0.0
          %780 = vmatmul.mubr.f32.gmra.mxu0 %v316
          %v781 = vpop.f32.mrf.mxu0
          %v782 = vadd.f32 %v557, %v781
          %v783 = vpop.f32.mrf.mxu0
          %784 = vmatprep.mubr.f32.mxu0 0.0
          %785 = vmatmul.mubr.f32.gmra.mxu0 %v319
          %v786 = vpop.f32.mrf.mxu0
          %v787 = vadd.f32 %v562, %v786
          %v788 = vpop.f32.mrf.mxu0
          %789 = vmatprep.mubr.f32.mxu0 0.0
          %790 = vmatmul.mubr.f32.gmra.mxu0 %v322
          %v791 = vpop.f32.mrf.mxu0
          %v792 = vadd.f32 %v567, %v791
          %v793 = vpop.f32.mrf.mxu0
          %794 = vmatprep.mubr.f32.mxu0 0.0
          %795 = vmatmul.mubr.f32.gmra.mxu0 %v325
          %v796 = vpop.f32.mrf.mxu0
          %v797 = vadd.f32 %v572, %v796
          %v798 = vpop.f32.mrf.mxu0
          %799 = vmatprep.mubr.f32.mxu0 0.0
          %800 = vmatmul.mubr.f32.gmra.mxu0 %v328
          %v801 = vpop.f32.mrf.mxu0
          %v802 = vadd.f32 %v577, %v801
          %v803 = vpop.f32.mrf.mxu0
          %804 = vmatprep.mubr.f32.mxu0 0.0
          %805 = vmatmul.mubr.f32.gmra.mxu0 %v331
          %v806 = vpop.f32.mrf.mxu0
          %v807 = vadd.f32 %v582, %v806
          %v808 = vpop.f32.mrf.mxu0
          %809 = vmatprep.mubr.f32.mxu0 0.0
          %810 = vmatmul.mubr.f32.gmra.mxu0 %v334
          %v811 = vpop.f32.mrf.mxu0
          %v812 = vadd.f32 %v587, %v811
          %v813 = vpop.f32.mrf.mxu0
          %814 = vmatprep.mubr.f32.mxu0 0.0
          %815 = vmatmul.mubr.f32.gmra.mxu0 %v337
          %v816 = vpop.f32.mrf.mxu0
          %v817 = vadd.f32 %v592, %v816
          %v818 = vpop.f32.mrf.mxu0
          %819 = vmatprep.mubr.f32.mxu0 0.0
          %820 = vmatmul.mubr.f32.gmra.mxu0 %v340
          %v821 = vpop.f32.mrf.mxu0
          %v822 = vadd.f32 %v597, %v821
          %v823 = vpop.f32.mrf.mxu0
          %824 = vmatprep.mubr.f32.mxu0 0.0
          %825 = vmatmul.mubr.f32.gmra.mxu0 %v343
          %v826 = vpop.f32.mrf.mxu0
          %v827 = vadd.f32 %v602, %v826
          %v828 = vpop.f32.mrf.mxu0
          %829 = vmatprep.mubr.f32.mxu0 0.0
          %830 = vmatmul.mubr.f32.gmra.mxu0 %v346
          %v831 = vpop.f32.mrf.mxu0
          %v832 = vadd.f32 %v607, %v831
          %v833 = vpop.f32.mrf.mxu0
          %834 = vmatprep.mubr.f32.mxu0 0.0
          %835 = vmatmul.mubr.f32.gmra.mxu0 %v349
          %v836 = vpop.f32.mrf.mxu0
          %v837 = vadd.f32 %v612, %v836
          %v838 = vpop.f32.mrf.mxu0
          %839 = vmatprep.mubr.f32.mxu0 0.0
          %840 = vmatmul.mubr.f32.gmra.mxu0 %v352
          %v841 = vpop.f32.mrf.mxu0
          %v842 = vadd.f32 %v617, %v841
          %v843 = vpop.f32.mrf.mxu0
          %844 = vmatprep.mubr.f32.mxu0 0.0
          %845 = vmatmul.mubr.f32.gmra.mxu0 %v355
          %v846 = vpop.f32.mrf.mxu0
          %v847 = vadd.f32 %v622, %v846
          %v848 = vpop.f32.mrf.mxu0
          %849 = vmatprep.mubr.f32.mxu0 0.0
          %850 = vmatmul.mubr.f32.gmra.mxu0 %v358
          %v851 = vpop.f32.mrf.mxu0
          %v852 = vadd.f32 %v627, %v851
          %v853 = vpop.f32.mrf.mxu0
          %854 = vmatprep.mubr.f32.mxu0 0.0
          %855 = vmatmul.mubr.f32.gmra.mxu0 %v361
          %v856 = vpop.f32.mrf.mxu0
          %v857 = vadd.f32 %v632, %v856
          %v858 = vpop.f32.mrf.mxu0
          %859 = vdwg.mxu0
          %vm860 = vcmask 130048
          %861 = vst.msk [vmem:[#allocation2] sm:$0xff] %vm860, %v702
          %862 = vst.msk [vmem:[#allocation2 + $0x8] sm:$0xff] %vm860, %v707
          %863 = vst.msk [vmem:[#allocation2 + $0x10] sm:$0xff] %vm860, %v712
          %864 = vst.msk [vmem:[#allocation2 + $0x18] sm:$0xff] %vm860, %v717
          %865 = vst.msk [vmem:[#allocation2 + $0x20] sm:$0xff] %vm860, %v722
          %866 = vst.msk [vmem:[#allocation2 + $0x28] sm:$0xff] %vm860, %v727
          %867 = vst.msk [vmem:[#allocation2 + $0x30] sm:$0xff] %vm860, %v732
          %868 = vst.msk [vmem:[#allocation2 + $0x38] sm:$0xff] %vm860, %v737
          %869 = vst.msk [vmem:[#allocation2 + $0x40] sm:$0xff] %vm860, %v742
          %870 = vst.msk [vmem:[#allocation2 + $0x48] sm:$0xff] %vm860, %v747
          %871 = vst.msk [vmem:[#allocation2 + $0x50] sm:$0xff] %vm860, %v752
          %872 = vst.msk [vmem:[#allocation2 + $0x58] sm:$0xff] %vm860, %v757
          %873 = vst.msk [vmem:[#allocation2 + $0x60] sm:$0xff] %vm860, %v762
          %874 = vst.msk [vmem:[#allocation2 + $0x68] sm:$0xff] %vm860, %v767
          %875 = vst.msk [vmem:[#allocation2 + $0x70] sm:$0xff] %vm860, %v772
          %876 = vst.msk [vmem:[#allocation2 + $0x78] sm:$0xff] %vm860, %v777
          %877 = vst.msk [vmem:[#allocation2 + $0x80] sm:$0xff] %vm860, %v782
          %878 = vst.msk [vmem:[#allocation2 + $0x88] sm:$0xff] %vm860, %v787
          %879 = vst.msk [vmem:[#allocation2 + $0x90] sm:$0xff] %vm860, %v792
          %880 = vst.msk [vmem:[#allocation2 + $0x98] sm:$0xff] %vm860, %v797
          %881 = vst.msk [vmem:[#allocation2 + $0xa0] sm:$0xff] %vm860, %v802
          %882 = vst.msk [vmem:[#allocation2 + $0xa8] sm:$0xff] %vm860, %v807
          %883 = vst.msk [vmem:[#allocation2 + $0xb0] sm:$0xff] %vm860, %v812
          %884 = vst.msk [vmem:[#allocation2 + $0xb8] sm:$0xff] %vm860, %v817
          %885 = vst.msk [vmem:[#allocation2 + $0xc0] sm:$0xff] %vm860, %v822
          %886 = vst.msk [vmem:[#allocation2 + $0xc8] sm:$0xff] %vm860, %v827
          %887 = vst.msk [vmem:[#allocation2 + $0xd0] sm:$0xff] %vm860, %v832
          %888 = vst.msk [vmem:[#allocation2 + $0xd8] sm:$0xff] %vm860, %v837
          %889 = vst.msk [vmem:[#allocation2 + $0xe0] sm:$0xff] %vm860, %v842
          %890 = vst.msk [vmem:[#allocation2 + $0xe8] sm:$0xff] %vm860, %v847
          %891 = vst.msk [vmem:[#allocation2 + $0xf0] sm:$0xff] %vm860, %v852
          %892 = vst.msk [vmem:[#allocation2 + $0xf8] sm:$0xff] %vm860, %v857
        $region52: #{tpu_custom_call.1} parent=39 // pred_fallthru
          _
        %v893 = vld [vmem:[%s233] sm:$0xff]
        %v894 = vld [vmem:[%s233 + $0x8] sm:$0xff]
        %v895 = vld [vmem:[%s233 + $0x10] sm:$0xff]
        %v896 = vld [vmem:[%s233 + $0x18] sm:$0xff]
        %v897 = vld [vmem:[%s233 + $0x20] sm:$0xff]
        %v898 = vld [vmem:[%s233 + $0x28] sm:$0xff]
        %v899 = vld [vmem:[%s233 + $0x30] sm:$0xff]
        %v900 = vld [vmem:[%s233 + $0x38] sm:$0xff]
        %v901 = vld [vmem:[%s233 + $0x40] sm:$0xff]
        %v902 = vld [vmem:[%s233 + $0x48] sm:$0xff]
        %v903 = vld [vmem:[%s233 + $0x50] sm:$0xff]
        %v904 = vld [vmem:[%s233 + $0x58] sm:$0xff]
        %v905 = vld [vmem:[%s233 + $0x60] sm:$0xff]
        %v906 = vld [vmem:[%s233 + $0x68] sm:$0xff]
        %v907 = vld [vmem:[%s233 + $0x70] sm:$0xff]
        %v908 = vld [vmem:[%s233 + $0x78] sm:$0xff]
        %v909 = vld [vmem:[%s233 + $0x80] sm:$0xff]
        %v910 = vld [vmem:[%s233 + $0x88] sm:$0xff]
        %v911 = vld [vmem:[%s233 + $0x90] sm:$0xff]
        %v912 = vld [vmem:[%s233 + $0x98] sm:$0xff]
        %v913 = vld [vmem:[%s233 + $0xa0] sm:$0xff]
        %v914 = vld [vmem:[%s233 + $0xa8] sm:$0xff]
        %v915 = vld [vmem:[%s233 + $0xb0] sm:$0xff]
        %v916 = vld [vmem:[%s233 + $0xb8] sm:$0xff]
        %v917 = vld [vmem:[%s233 + $0xc0] sm:$0xff]
        %v918 = vld [vmem:[%s233 + $0xc8] sm:$0xff]
        %v919 = vld [vmem:[%s233 + $0xd0] sm:$0xff]
        %v920 = vld [vmem:[%s233 + $0xd8] sm:$0xff]
        %v921 = vld [vmem:[%s233 + $0xe0] sm:$0xff]
        %v922 = vld [vmem:[%s233 + $0xe8] sm:$0xff]
        %v923 = vld [vmem:[%s233 + $0xf0] sm:$0xff]
        %v924 = vld [vmem:[%s233 + $0xf8] sm:$0xff]
        %v925 = vld [vmem:[#allocation2] sm:$0xff]
        %v926 = vld [vmem:[#allocation2 + $0x8] sm:$0xff]
        %v927 = vld [vmem:[#allocation2 + $0x10] sm:$0xff]
        %v928 = vld [vmem:[#allocation2 + $0x18] sm:$0xff]
        %v929 = vld [vmem:[#allocation2 + $0x20] sm:$0xff]
        %v930 = vld [vmem:[#allocation2 + $0x28] sm:$0xff]
        %v931 = vld [vmem:[#allocation2 + $0x30] sm:$0xff]
        %v932 = vld [vmem:[#allocation2 + $0x38] sm:$0xff]
        %v933 = vld [vmem:[#allocation2 + $0x40] sm:$0xff]
        %v934 = vld [vmem:[#allocation2 + $0x48] sm:$0xff]
        %v935 = vld [vmem:[#allocation2 + $0x50] sm:$0xff]
        %v936 = vld [vmem:[#allocation2 + $0x58] sm:$0xff]
        %v937 = vld [vmem:[#allocation2 + $0x60] sm:$0xff]
        %v938 = vld [vmem:[#allocation2 + $0x68] sm:$0xff]
        %v939 = vld [vmem:[#allocation2 + $0x70] sm:$0xff]
        %v940 = vld [vmem:[#allocation2 + $0x78] sm:$0xff]
        %v941 = vld [vmem:[#allocation2 + $0x80] sm:$0xff]
        %v942 = vld [vmem:[#allocation2 + $0x88] sm:$0xff]
        %v943 = vld [vmem:[#allocation2 + $0x90] sm:$0xff]
        %v944 = vld [vmem:[#allocation2 + $0x98] sm:$0xff]
        %v945 = vld [vmem:[#allocation2 + $0xa0] sm:$0xff]
        %v946 = vld [vmem:[#allocation2 + $0xa8] sm:$0xff]
        %v947 = vld [vmem:[#allocation2 + $0xb0] sm:$0xff]
        %v948 = vld [vmem:[#allocation2 + $0xb8] sm:$0xff]
        %v949 = vld [vmem:[#allocation2 + $0xc0] sm:$0xff]
        %v950 = vld [vmem:[#allocation2 + $0xc8] sm:$0xff]
        %v951 = vld [vmem:[#allocation2 + $0xd0] sm:$0xff]
        %v952 = vld [vmem:[#allocation2 + $0xd8] sm:$0xff]
        %v953 = vld [vmem:[#allocation2 + $0xe0] sm:$0xff]
        %v954 = vld [vmem:[#allocation2 + $0xe8] sm:$0xff]
        %v955 = vld [vmem:[#allocation2 + $0xf0] sm:$0xff]
        %v956 = vld [vmem:[#allocation2 + $0xf8] sm:$0xff]
        %957 = vmatprep.subr.mxu0 0.0
        %958 = vmatpush1.msra.mxu0 %v940
        %959 = vmatprep.subr.mxu0 0.0
        %960 = vmatpush1.msra.mxu0 %v939
        %961 = vmatprep.subr.mxu0 0.0
        %962 = vmatpush1.msra.mxu0 %v938
        %963 = vmatprep.subr.mxu0 0.0
        %964 = vmatpush1.msra.mxu0 %v937
        %965 = vmatprep.subr.mxu0 0.0
        %966 = vmatpush1.msra.mxu0 %v936
        %967 = vmatprep.subr.mxu0 0.0
        %968 = vmatpush1.msra.mxu0 %v935
        %969 = vmatprep.subr.mxu0 0.0
        %970 = vmatpush1.msra.mxu0 %v934
        %971 = vmatprep.subr.mxu0 0.0
        %972 = vmatpush1.msra.mxu0 %v933
        %973 = vmatprep.subr.mxu0 0.0
        %974 = vmatpush1.msra.mxu0 %v932
        %975 = vmatprep.subr.mxu0 0.0
        %976 = vmatpush1.msra.mxu0 %v931
        %977 = vmatprep.subr.mxu0 0.0
        %978 = vmatpush1.msra.mxu0 %v930
        %979 = vmatprep.subr.mxu0 0.0
        %980 = vmatpush1.msra.mxu0 %v929
        %981 = vmatprep.subr.mxu0 0.0
        %982 = vmatpush1.msra.mxu0 %v928
        %983 = vmatprep.subr.mxu0 0.0
        %984 = vmatpush1.msra.mxu0 %v927
        %985 = vmatprep.subr.mxu0 0.0
        %986 = vmatpush1.msra.mxu0 %v926
        %987 = vmatprep.subr.mxu0 0.0
        %988 = vmatpush1.msra.mxu0 %v925
        %989 = vmatprep.subr.mxu0 0.0
        %990 = vmatpush2.msra.mxu0 %v956
        %991 = vmatprep.subr.mxu0 0.0
        %992 = vmatpush2.msra.mxu0 %v955
        %993 = vmatprep.subr.mxu0 0.0
        %994 = vmatpush2.msra.mxu0 %v954
        %995 = vmatprep.subr.mxu0 0.0
        %996 = vmatpush2.msra.mxu0 %v953
        %997 = vmatprep.subr.mxu0 0.0
        %998 = vmatpush2.msra.mxu0 %v952
        %999 = vmatprep.subr.mxu0 0.0
        %1000 = vmatpush2.msra.mxu0 %v951
        %1001 = vmatprep.subr.mxu0 0.0
        %1002 = vmatpush2.msra.mxu0 %v950
        %1003 = vmatprep.subr.mxu0 0.0
        %1004 = vmatpush2.msra.mxu0 %v949
        %1005 = vmatprep.subr.mxu0 0.0
        %1006 = vmatpush2.msra.mxu0 %v948
        %1007 = vmatprep.subr.mxu0 0.0
        %1008 = vmatpush2.msra.mxu0 %v947
        %1009 = vmatprep.subr.mxu0 0.0
        %1010 = vmatpush2.msra.mxu0 %v946
        %1011 = vmatprep.subr.mxu0 0.0
        %1012 = vmatpush2.msra.mxu0 %v945
        %1013 = vmatprep.subr.mxu0 0.0
        %1014 = vmatpush2.msra.mxu0 %v944
        %1015 = vmatprep.subr.mxu0 0.0
        %1016 = vmatpush2.msra.mxu0 %v943
        %1017 = vmatprep.subr.mxu0 0.0
        %1018 = vmatpush2.msra.mxu0 %v942
        %1019 = vmatprep.subr.mxu0 0.0
        %1020 = vmatpush2.msra.mxu0 %v941
        %1021 = vmatprep.mubr.f32.mxu0 %v894
        %1022 = vmatmul.mubr.f32.gmra.mxu0 %v893
        %v1023 = vpop.f32.mrf.mxu0
        %v1024 = vadd.f32 0.0, %v1023
        %v1025 = vpop.f32.mrf.mxu0
        %1026 = vmatprep.mubr.f32.mxu0 %v896
        %1027 = vmatmul.mubr.f32.gmra.mxu0 %v895
        %v1028 = vpop.f32.mrf.mxu0
        %v1029 = vadd.f32 0.0, %v1028
        %v1030 = vpop.f32.mrf.mxu0
        %1031 = vmatprep.mubr.f32.mxu0 %v898
        %1032 = vmatmul.mubr.f32.gmra.mxu0 %v897
        %v1033 = vpop.f32.mrf.mxu0
        %v1034 = vadd.f32 0.0, %v1033
        %v1035 = vpop.f32.mrf.mxu0
        %1036 = vmatprep.mubr.f32.mxu0 %v900
        %1037 = vmatmul.mubr.f32.gmra.mxu0 %v899
        %v1038 = vpop.f32.mrf.mxu0
        %v1039 = vadd.f32 0.0, %v1038
        %v1040 = vpop.f32.mrf.mxu0
        %1041 = vmatprep.mubr.f32.mxu0 %v902
        %1042 = vmatmul.mubr.f32.gmra.mxu0 %v901
        %v1043 = vpop.f32.mrf.mxu0
        %v1044 = vadd.f32 0.0, %v1043
        %v1045 = vpop.f32.mrf.mxu0
        %1046 = vmatprep.mubr.f32.mxu0 %v904
        %1047 = vmatmul.mubr.f32.gmra.mxu0 %v903
        %v1048 = vpop.f32.mrf.mxu0
        %v1049 = vadd.f32 0.0, %v1048
        %v1050 = vpop.f32.mrf.mxu0
        %1051 = vmatprep.mubr.f32.mxu0 %v906
        %1052 = vmatmul.mubr.f32.gmra.mxu0 %v905
        %v1053 = vpop.f32.mrf.mxu0
        %v1054 = vadd.f32 0.0, %v1053
        %v1055 = vpop.f32.mrf.mxu0
        %1056 = vmatprep.mubr.f32.mxu0 %v908
        %1057 = vmatmul.mubr.f32.gmra.mxu0 %v907
        %v1058 = vpop.f32.mrf.mxu0
        %v1059 = vadd.f32 0.0, %v1058
        %v1060 = vpop.f32.mrf.mxu0
        %1061 = vmatprep.mubr.f32.mxu0 %v910
        %1062 = vmatmul.mubr.f32.gmra.mxu0 %v909
        %v1063 = vpop.f32.mrf.mxu0
        %v1064 = vadd.f32 0.0, %v1063
        %v1065 = vpop.f32.mrf.mxu0
        %1066 = vmatprep.mubr.f32.mxu0 %v912
        %1067 = vmatmul.mubr.f32.gmra.mxu0 %v911
        %v1068 = vpop.f32.mrf.mxu0
        %v1069 = vadd.f32 0.0, %v1068
        %v1070 = vpop.f32.mrf.mxu0
        %1071 = vmatprep.mubr.f32.mxu0 %v914
        %1072 = vmatmul.mubr.f32.gmra.mxu0 %v913
        %v1073 = vpop.f32.mrf.mxu0
        %v1074 = vadd.f32 0.0, %v1073
        %v1075 = vpop.f32.mrf.mxu0
        %1076 = vmatprep.mubr.f32.mxu0 %v916
        %1077 = vmatmul.mubr.f32.gmra.mxu0 %v915
        %v1078 = vpop.f32.mrf.mxu0
        %v1079 = vadd.f32 0.0, %v1078
        %v1080 = vpop.f32.mrf.mxu0
        %1081 = vmatprep.mubr.f32.mxu0 %v918
        %1082 = vmatmul.mubr.f32.gmra.mxu0 %v917
        %v1083 = vpop.f32.mrf.mxu0
        %v1084 = vadd.f32 0.0, %v1083
        %v1085 = vpop.f32.mrf.mxu0
        %1086 = vmatprep.mubr.f32.mxu0 %v920
        %1087 = vmatmul.mubr.f32.gmra.mxu0 %v919
        %v1088 = vpop.f32.mrf.mxu0
        %v1089 = vadd.f32 0.0, %v1088
        %v1090 = vpop.f32.mrf.mxu0
        %1091 = vmatprep.mubr.f32.mxu0 %v922
        %1092 = vmatmul.mubr.f32.gmra.mxu0 %v921
        %v1093 = vpop.f32.mrf.mxu0
        %v1094 = vadd.f32 0.0, %v1093
        %v1095 = vpop.f32.mrf.mxu0
        %1096 = vmatprep.mubr.f32.mxu0 %v924
        %1097 = vmatmul.mubr.f32.gmra.mxu0 %v923
        %v1098 = vpop.f32.mrf.mxu0
        %v1099 = vadd.f32 0.0, %v1098
        %v1100 = vpop.f32.mrf.mxu0
        %1101 = vdwg.mxu0
        %s1102 = smul.u32 %s24, 128
        %s1103 = scalar_lea.vmem %s3, %s1102
        %v1104 = vld [vmem:[%s1103] sm:$0xff]
        %v1105 = vld [vmem:[%s1103 + $0x8] sm:$0xff]
        %v1106 = vld [vmem:[%s1103 + $0x10] sm:$0xff]
        %v1107 = vld [vmem:[%s1103 + $0x18] sm:$0xff]
        %v1108 = vld [vmem:[%s1103 + $0x20] sm:$0xff]
        %v1109 = vld [vmem:[%s1103 + $0x28] sm:$0xff]
        %v1110 = vld [vmem:[%s1103 + $0x30] sm:$0xff]
        %v1111 = vld [vmem:[%s1103 + $0x38] sm:$0xff]
        %v1112 = vld [vmem:[%s1103 + $0x40] sm:$0xff]
        %v1113 = vld [vmem:[%s1103 + $0x48] sm:$0xff]
        %v1114 = vld [vmem:[%s1103 + $0x50] sm:$0xff]
        %v1115 = vld [vmem:[%s1103 + $0x58] sm:$0xff]
        %v1116 = vld [vmem:[%s1103 + $0x60] sm:$0xff]
        %v1117 = vld [vmem:[%s1103 + $0x68] sm:$0xff]
        %v1118 = vld [vmem:[%s1103 + $0x70] sm:$0xff]
        %v1119 = vld [vmem:[%s1103 + $0x78] sm:$0xff]
        %s1120 = sld [smem:[#allocation3]]
        %s1121 = sadd.f32 %s1120, 1.0
        %v1122 = vstv %s1121
        %v1123 = vmul.f32 %v1122, %v1104
        %v1124 = vmul.f32 %v1122, %v1105
        %v1125 = vmul.f32 %v1122, %v1106
        %v1126 = vmul.f32 %v1122, %v1107
        %v1127 = vmul.f32 %v1122, %v1108
        %v1128 = vmul.f32 %v1122, %v1109
        %v1129 = vmul.f32 %v1122, %v1110
        %v1130 = vmul.f32 %v1122, %v1111
        %v1131 = vmul.f32 %v1122, %v1112
        %v1132 = vmul.f32 %v1122, %v1113
        %v1133 = vmul.f32 %v1122, %v1114
        %v1134 = vmul.f32 %v1122, %v1115
        %v1135 = vmul.f32 %v1122, %v1116
        %v1136 = vmul.f32 %v1122, %v1117
        %v1137 = vmul.f32 %v1122, %v1118
        %v1138 = vmul.f32 %v1122, %v1119
        %v1139 = vadd.f32 %v1123, %v1024
        %v1140 = vadd.f32 %v1124, %v1029
        %v1141 = vadd.f32 %v1125, %v1034
        %v1142 = vadd.f32 %v1126, %v1039
        %v1143 = vadd.f32 %v1127, %v1044
        %v1144 = vadd.f32 %v1128, %v1049
        %v1145 = vadd.f32 %v1129, %v1054
        %v1146 = vadd.f32 %v1130, %v1059
        %v1147 = vadd.f32 %v1131, %v1064
        %v1148 = vadd.f32 %v1132, %v1069
        %v1149 = vadd.f32 %v1133, %v1074
        %v1150 = vadd.f32 %v1134, %v1079
        %v1151 = vadd.f32 %v1135, %v1084
        %v1152 = vadd.f32 %v1136, %v1089
        %v1153 = vadd.f32 %v1137, %v1094
        %v1154 = vadd.f32 %v1138, %v1099
        %v1155 = vld [vmem:[%s4] sm:$0xff]
        %v1156 = vld [vmem:[%s4 + $0x8] sm:$0xff]
        %vm1157 = vcmask 130048
        %v1159 = vsel %vm1157, %v1139, 0
        %v1162 = vsel %vm1157, %v1140, 0
        %v1165 = vsel %vm1157, %v1141, 0
        %v1168 = vsel %vm1157, %v1142, 0
        %v1171 = vsel %vm1157, %v1143, 0
        %v1174 = vsel %vm1157, %v1144, 0
        %v1177 = vsel %vm1157, %v1145, 0
        %v1180 = vsel %vm1157, %v1146, 0
        %v1183 = vsel %vm1157, %v1147, 0
        %v1186 = vsel %vm1157, %v1148, 0
        %v1189 = vsel %vm1157, %v1149, 0
        %v1192 = vsel %vm1157, %v1150, 0
        %v1195 = vsel %vm1157, %v1151, 0
        %v1198 = vsel %vm1157, %v1152, 0
        %v1201 = vsel %vm1157, %v1153, 0
        %v1204 = vsel %vm1157, %v1154, 0
        %1206 = vmatprep.subr.mxu0 0.0
        %1207 = vmatpush1.msra.mxu0 0.0
        %1208 = vmatprep.subr.mxu0 0.0
        %1209 = vmatpush1.msra.mxu0 0.0
        %1210 = vmatprep.subr.mxu0 0.0
        %1211 = vmatpush1.msra.mxu0 0.0
        %1212 = vmatprep.subr.mxu0 0.0
        %1213 = vmatpush1.msra.mxu0 0.0
        %1214 = vmatprep.subr.mxu0 0.0
        %1215 = vmatpush1.msra.mxu0 0.0
        %1216 = vmatprep.subr.mxu0 0.0
        %1217 = vmatpush1.msra.mxu0 0.0
        %1218 = vmatprep.subr.mxu0 0.0
        %1219 = vmatpush1.msra.mxu0 0.0
        %1220 = vmatprep.subr.mxu0 0.0
        %1221 = vmatpush1.msra.mxu0 0.0
        %1222 = vmatprep.subr.mxu0 0.0
        %1223 = vmatpush1.msra.mxu0 0.0
        %1224 = vmatprep.subr.mxu0 0.0
        %1225 = vmatpush1.msra.mxu0 0.0
        %1226 = vmatprep.subr.mxu0 0.0
        %1227 = vmatpush1.msra.mxu0 0.0
        %1228 = vmatprep.subr.mxu0 0.0
        %1229 = vmatpush1.msra.mxu0 0.0
        %1230 = vmatprep.subr.mxu0 0.0
        %1231 = vmatpush1.msra.mxu0 0.0
        %1232 = vmatprep.subr.mxu0 0.0
        %1233 = vmatpush1.msra.mxu0 0.0
        %1234 = vmatprep.subr.mxu0 0.0
        %1235 = vmatpush1.msra.mxu0 %v1156
        %1236 = vmatprep.subr.mxu0 0.0
        %1237 = vmatpush1.msra.mxu0 %v1155
        %1238 = vmatprep.subr.mxu0 0.0
        %1239 = vmatpush2.msra.mxu0 0.0
        %1240 = vmatprep.subr.mxu0 0.0
        %1241 = vmatpush2.msra.mxu0 0.0
        %1242 = vmatprep.subr.mxu0 0.0
        %1243 = vmatpush2.msra.mxu0 0.0
        %1244 = vmatprep.subr.mxu0 0.0
        %1245 = vmatpush2.msra.mxu0 0.0
        %1246 = vmatprep.subr.mxu0 0.0
        %1247 = vmatpush2.msra.mxu0 0.0
        %1248 = vmatprep.subr.mxu0 0.0
        %1249 = vmatpush2.msra.mxu0 0.0
        %1250 = vmatprep.subr.mxu0 0.0
        %1251 = vmatpush2.msra.mxu0 0.0
        %1252 = vmatprep.subr.mxu0 0.0
        %1253 = vmatpush2.msra.mxu0 0.0
        %1254 = vmatprep.subr.mxu0 0.0
        %1255 = vmatpush2.msra.mxu0 0.0
        %1256 = vmatprep.subr.mxu0 0.0
        %1257 = vmatpush2.msra.mxu0 0.0
        %1258 = vmatprep.subr.mxu0 0.0
        %1259 = vmatpush2.msra.mxu0 0.0
        %1260 = vmatprep.subr.mxu0 0.0
        %1261 = vmatpush2.msra.mxu0 0.0
        %1262 = vmatprep.subr.mxu0 0.0
        %1263 = vmatpush2.msra.mxu0 0.0
        %1264 = vmatprep.subr.mxu0 0.0
        %1265 = vmatpush2.msra.mxu0 0.0
        %1266 = vmatprep.subr.mxu0 0.0
        %1267 = vmatpush2.msra.mxu0 0.0
        %1268 = vmatprep.subr.mxu0 0.0
        %1269 = vmatpush2.msra.mxu0 0.0
        %1270 = vmatprep.mubr.f32.mxu0 0.0
        %1271 = vmatmul.mubr.f32.gmra.mxu0 %v1159
        %v1272 = vpop.f32.mrf.mxu0
        %v1273 = vadd.f32 0.0, %v1272
        %v1274 = vpop.f32.mrf.mxu0
        %1275 = vmatprep.mubr.f32.mxu0 0.0
        %1276 = vmatmul.mubr.f32.gmra.mxu0 %v1162
        %v1277 = vpop.f32.mrf.mxu0
        %v1278 = vadd.f32 0.0, %v1277
        %v1279 = vpop.f32.mrf.mxu0
        %1280 = vmatprep.mubr.f32.mxu0 0.0
        %1281 = vmatmul.mubr.f32.gmra.mxu0 %v1165
        %v1282 = vpop.f32.mrf.mxu0
        %v1283 = vadd.f32 0.0, %v1282
        %v1284 = vpop.f32.mrf.mxu0
        %1285 = vmatprep.mubr.f32.mxu0 0.0
        %1286 = vmatmul.mubr.f32.gmra.mxu0 %v1168
        %v1287 = vpop.f32.mrf.mxu0
        %v1288 = vadd.f32 0.0, %v1287
        %v1289 = vpop.f32.mrf.mxu0
        %1290 = vmatprep.mubr.f32.mxu0 0.0
        %1291 = vmatmul.mubr.f32.gmra.mxu0 %v1171
        %v1292 = vpop.f32.mrf.mxu0
        %v1293 = vadd.f32 0.0, %v1292
        %v1294 = vpop.f32.mrf.mxu0
        %1295 = vmatprep.mubr.f32.mxu0 0.0
        %1296 = vmatmul.mubr.f32.gmra.mxu0 %v1174
        %v1297 = vpop.f32.mrf.mxu0
        %v1298 = vadd.f32 0.0, %v1297
        %v1299 = vpop.f32.mrf.mxu0
        %1300 = vmatprep.mubr.f32.mxu0 0.0
        %1301 = vmatmul.mubr.f32.gmra.mxu0 %v1177
        %v1302 = vpop.f32.mrf.mxu0
        %v1303 = vadd.f32 0.0, %v1302
        %v1304 = vpop.f32.mrf.mxu0
        %1305 = vmatprep.mubr.f32.mxu0 0.0
        %1306 = vmatmul.mubr.f32.gmra.mxu0 %v1180
        %v1307 = vpop.f32.mrf.mxu0
        %v1308 = vadd.f32 0.0, %v1307
        %v1309 = vpop.f32.mrf.mxu0
        %1310 = vmatprep.mubr.f32.mxu0 0.0
        %1311 = vmatmul.mubr.f32.gmra.mxu0 %v1183
        %v1312 = vpop.f32.mrf.mxu0
        %v1313 = vadd.f32 0.0, %v1312
        %v1314 = vpop.f32.mrf.mxu0
        %1315 = vmatprep.mubr.f32.mxu0 0.0
        %1316 = vmatmul.mubr.f32.gmra.mxu0 %v1186
        %v1317 = vpop.f32.mrf.mxu0
        %v1318 = vadd.f32 0.0, %v1317
        %v1319 = vpop.f32.mrf.mxu0
        %1320 = vmatprep.mubr.f32.mxu0 0.0
        %1321 = vmatmul.mubr.f32.gmra.mxu0 %v1189
        %v1322 = vpop.f32.mrf.mxu0
        %v1323 = vadd.f32 0.0, %v1322
        %v1324 = vpop.f32.mrf.mxu0
        %1325 = vmatprep.mubr.f32.mxu0 0.0
        %1326 = vmatmul.mubr.f32.gmra.mxu0 %v1192
        %v1327 = vpop.f32.mrf.mxu0
        %v1328 = vadd.f32 0.0, %v1327
        %v1329 = vpop.f32.mrf.mxu0
        %1330 = vmatprep.mubr.f32.mxu0 0.0
        %1331 = vmatmul.mubr.f32.gmra.mxu0 %v1195
        %v1332 = vpop.f32.mrf.mxu0
        %v1333 = vadd.f32 0.0, %v1332
        %v1334 = vpop.f32.mrf.mxu0
        %1335 = vmatprep.mubr.f32.mxu0 0.0
        %1336 = vmatmul.mubr.f32.gmra.mxu0 %v1198
        %v1337 = vpop.f32.mrf.mxu0
        %v1338 = vadd.f32 0.0, %v1337
        %v1339 = vpop.f32.mrf.mxu0
        %1340 = vmatprep.mubr.f32.mxu0 0.0
        %1341 = vmatmul.mubr.f32.gmra.mxu0 %v1201
        %v1342 = vpop.f32.mrf.mxu0
        %v1343 = vadd.f32 0.0, %v1342
        %v1344 = vpop.f32.mrf.mxu0
        %1345 = vmatprep.mubr.f32.mxu0 0.0
        %1346 = vmatmul.mubr.f32.gmra.mxu0 %v1204
        %v1347 = vpop.f32.mrf.mxu0
        %v1348 = vadd.f32 0.0, %v1347
        %v1349 = vpop.f32.mrf.mxu0
        %1350 = vdwg.mxu0
        %1351 = vst [vmem:[%s259] sm:$0xff] %v1273
        %1352 = vst [vmem:[%s259 + $0x8] sm:$0xff] %v1278
        %1353 = vst [vmem:[%s259 + $0x10] sm:$0xff] %v1283
        %1354 = vst [vmem:[%s259 + $0x18] sm:$0xff] %v1288
        %1355 = vst [vmem:[%s259 + $0x20] sm:$0xff] %v1293
        %1356 = vst [vmem:[%s259 + $0x28] sm:$0xff] %v1298
        %1357 = vst [vmem:[%s259 + $0x30] sm:$0xff] %v1303
        %1358 = vst [vmem:[%s259 + $0x38] sm:$0xff] %v1308
        %1359 = vst [vmem:[%s259 + $0x40] sm:$0xff] %v1313
        %1360 = vst [vmem:[%s259 + $0x48] sm:$0xff] %v1318
        %1361 = vst [vmem:[%s259 + $0x50] sm:$0xff] %v1323
        %1362 = vst [vmem:[%s259 + $0x58] sm:$0xff] %v1328
        %1363 = vst [vmem:[%s259 + $0x60] sm:$0xff] %v1333
        %1364 = vst [vmem:[%s259 + $0x68] sm:$0xff] %v1338
        %1365 = vst [vmem:[%s259 + $0x70] sm:$0xff] %v1343
        %1366 = vst [vmem:[%s259 + $0x78] sm:$0xff] %v1348
        %s1367 = sand.u32 %s142, 1
        %s1368 = scalar_lea.sflag [#allocation6], %s1367
        %s1369 = sand.u32 %s142, 1
        %s1370 = smul.addr %s1369, 128
        %s1371 = scalar_lea.vmem [#allocation9], %s1370
        // Predicated region
        $region53: #{tpu_custom_call.1} parent=39 // pred_check
          %p1372 = pneg %p152
        $region54: #{tpu_custom_call.1} parent=39 // pred_check_branch
          %1374 = sbr.rel (%p1372) target = $region56
        $region55: #{tpu_custom_call.1} parent=39 // pred_region
          %s1375 = smul.u32 16, %s24
          %s1377 = ssub.s32 2048, 2048
          %1378 = vsyncadd %s1368, %s1377
          %s1379 = smul.addr %s1375, 128
          %s1380 = scalar_lea.hbm %s5, %s1379
          %s1381 = sshll.u32 %s1371, 4
          %s1382 = int_to_ptr.vmem [resolvable:$true] %s1381
          %1387 = dma.vmem_to_hbm [thread:$0]  %s1382, 2048, %s1380, %s1368, 128, 128, 8
        $region56: #{tpu_custom_call.1} parent=39 // pred_fallthru
          _
      $region40: #{tpu_custom_call.1} parent=5 // pred_fallthru
        _
      %p1388 = scmp.le.s32.totalorder 2, %s19
      // Predicated region
      $region57: #{tpu_custom_call.1} parent=5 // pred_check
        %p1389 = pneg %p1388
      $region58: #{tpu_custom_call.1} parent=5 // pred_check_branch
        %1391 = sbr.rel (%p1389) target = $region60
      $region59: #{tpu_custom_call.1} parent=5 // pred_region
        %s1392 = ssub.s32 %s19, 2
        // Predicated region
        $region61: #{tpu_custom_call.1} parent=59 // pred_check
          %p1393 = pneg %p158
        $region62: #{tpu_custom_call.1} parent=59 // pred_check_branch
          %1395 = sbr.rel (%p1393) target = $region64
        $region63: #{tpu_custom_call.1} parent=59 // pred_region
          %s1396 = sand.u32 %s143, 1
          %s1397 = scalar_lea.sflag [#allocation6], %s1396
          %s1398 = sand.u32 %s143, 1
          %s1399 = smul.addr %s1398, 128
          %s1400 = scalar_lea.vmem [#allocation9], %s1399
          %1401 = dma.done %s1397, 2048
        $region64: #{tpu_custom_call.1} parent=59 // pred_fallthru
          _
      $region60: #{tpu_custom_call.1} parent=5 // pred_fallthru
        _
    $region6: #{tpu_custom_call.1} parent=1 // loop_footer
      %s23 = sadd.s32 1, %s19
    $region7: #{tpu_custom_call.1} parent=1 // loop_footer_branch
      %18 = sbr.rel target = $region3
    $region8: #{tpu_custom_call.1} parent=1 // loop_exit
      _
    %1402 = vsyncpa [#allocation5], 1
    %s1403 = scalar_lea.sflag [#allocation5], 1
    %1404 = vsyncpa %s1403, 1
    %1405 = vsyncpa [#allocation8], 1
    %s1406 = scalar_lea.sflag [#allocation8], 1
    %1407 = vsyncpa %s1406, 1
    %1408 = vsyncpa [#allocation6], 1
    %s1409 = scalar_lea.sflag [#allocation6], 1
    %1410 = vsyncpa %s1409, 1

</llo_original>
